<compile_context>
chip_gen: v5e
topology: v5e:2x2
jax: 0.10.0
libtpu: 0.0.40
codegen_flags: <defaults>
</compile_context>

<pallas_src>
import jax
import jax.numpy as jnp
from jax.experimental import pallas as pl
from jax.experimental.pallas import tpu as pltpu


def _fused_1x1_convs_kernel(x_ref, w1_ref, b1_ref, w2_ref, b2_ref, o_ref):
    # Channel-major layout:
    #   x_ref : [1, C_in, T_HW] f32   (one batch element, one pixel tile)
    #   w1_ref: [C_mid, C_in]  bf16,  b1_ref: [C_mid, 1] f32
    #   w2_ref: [C_out, C_mid] bf16,  b2_ref: [C_out, 1] f32
    #   o_ref : [1, C_out, T_HW]
    x = x_ref[0].astype(jnp.bfloat16)                                # [C_in, T_HW]
    h = jnp.dot(w1_ref[...], x, preferred_element_type=jnp.float32)  # [C_mid, T_HW]
    h = jnp.maximum(h + b1_ref[...], 0.0)                            # bias + ReLU (f32)
    o = jnp.dot(w2_ref[...], h.astype(jnp.bfloat16),
                preferred_element_type=jnp.float32)                  # [C_out, T_HW]
    o_ref[0] = jnp.maximum(o + b2_ref[...], 0.0).astype(o_ref.dtype)


def fused_1x1_convs(x_nchw, w1, b1, w2, b2, *, hw_tile=4096,
                    out_dtype=jnp.float32):
    """Fused 1x1 conv -> ReLU -> 1x1 conv -> ReLU.

    x_nchw: [N, C_in, H, W] float32 (PyTorch NCHW layout)
    w1:     [C_mid, C_in]   (PyTorch Conv2d weight with the 1x1 dims squeezed)
    b1:     [C_mid]
    w2:     [C_out, C_mid]
    b2:     [C_out]
    returns [N, C_out, H, W] in `out_dtype`
    """
    n, c_in, h, w = x_nchw.shape
    c_mid = w1.shape[0]
    c_out = w2.shape[0]
    hw = h * w

    # Free reshape: NCHW -> [N, C_in, H*W] (channel-major, no data movement).
    x_mat = x_nchw.reshape(n, c_in, hw)

    # Pixel tiling (no wrapper pad / slice; ragged last block is masked by
    # Pallas edge-block handling):
    #  - large HW : lane-aligned hw_tile blocks (default 4096 -> ~21 MiB of
    #    double-buffered x/out tiles, under the explicit 32 MiB VMEM limit).
    #  - small HW > 128 (e.g. 13x13 = 169): lane-aligned 128-multiple tile
    #    sized so there are >= 2 tiles -> lane-dense stores and two grid
    #    points for v7x's two TensorCores (169 -> two 128-lane tiles).
    #  - tiny HW <= 128: one full-extent block (block dim == array dim).
    if hw > hw_tile:
        t_hw = hw_tile
    elif hw > 128:
        t_hw = 128 * pl.cdiv(pl.cdiv(hw, 2), 128)
    else:
        t_hw = hw
    num_hw_tiles = pl.cdiv(hw, t_hw)

    # MXU inputs in bf16 (native rate on every generation); f32 accumulation
    # is requested inside the kernel.  Biases stay f32 as [C, 1] columns that
    # broadcast over the pixel (lane) axis.
    w1_bf = w1.astype(jnp.bfloat16)
    w2_bf = w2.astype(jnp.bfloat16)
    b1_2d = b1.reshape(c_mid, 1).astype(jnp.float32)
    b2_2d = b2.reshape(c_out, 1).astype(jnp.float32)

    out = pl.pallas_call(
        _fused_1x1_convs_kernel,
        out_shape=jax.ShapeDtypeStruct((n, c_out, hw), out_dtype),
        grid=(n, num_hw_tiles),
        in_specs=[
            pl.BlockSpec((1, c_in, t_hw), lambda b, j: (b, 0, j)),
            pl.BlockSpec((c_mid, c_in), lambda b, j: (0, 0)),   # weights resident
            pl.BlockSpec((c_mid, 1), lambda b, j: (0, 0)),      # bias resident
            pl.BlockSpec((c_out, c_mid), lambda b, j: (0, 0)),  # weights resident
            pl.BlockSpec((c_out, 1), lambda b, j: (0, 0)),      # bias resident
        ],
        out_specs=pl.BlockSpec((1, c_out, t_hw), lambda b, j: (b, 0, j)),
        compiler_params=pltpu.CompilerParams(
            # Independent (batch, pixel-tile) iterations -> megacore / 2-TC
            # sharding is legal on v7x.
            dimension_semantics=("parallel", "parallel"),
            # Explicit limit: covers the ~21 MiB double-buffered tiles at
            # hw_tile=4096 even on v5e's 16 MiB default, and is safely under
            # v7x's 64 MiB physical VMEM.
            vmem_limit_bytes=32 * 1024 * 1024,
        ),
    )(x_mat, w1_bf, b1_2d, w2_bf, b2_2d)

    # Free reshape back to NCHW.
    return out.reshape(n, c_out, h, w)


if __name__ == "__main__":
    key = jax.random.PRNGKey(0)
    k_x, k_w1, k_b1, k_w2, k_b2 = jax.random.split(key, 5)

    # Shapes implied by the module: x47 = [1, 384, 13, 13].
    N, C_IN, H, W = 1, 384, 13, 13
    C_MID, C_OUT = 64, 256

    x = jax.random.normal(k_x, (N, C_IN, H, W), dtype=jnp.float32)
    # PyTorch Conv2d weight layout [C_out, C_in, 1, 1] with the 1x1 dims
    # squeezed -> [C_out, C_in]; no transpose needed for channel-major math.
    w1 = jax.random.normal(k_w1, (C_MID, C_IN), dtype=jnp.float32) * 0.05
    b1 = jax.random.normal(k_b1, (C_MID,), dtype=jnp.float32) * 0.05
    w2 = jax.random.normal(k_w2, (C_OUT, C_MID), dtype=jnp.float32) * 0.05
    b2 = jax.random.normal(k_b2, (C_OUT,), dtype=jnp.float32) * 0.05

    fwd = jax.jit(fused_1x1_convs)
    out = jax.block_until_ready(fwd(x, w1, b1, w2, b2))
    assert out.shape == (N, C_OUT, H, W)

    # Reference in full f32 (1x1 convs == per-pixel channel matmuls).
    x_mat = x.reshape(N, C_IN, H * W)
    h_ref = jnp.maximum(
        jnp.einsum("oc,ncp->nop", w1, x_mat) + b1[None, :, None], 0.0)
    o_ref = jnp.maximum(
        jnp.einsum("oc,ncp->nop", w2, h_ref) + b2[None, :, None], 0.0)
    ref = o_ref.reshape(N, C_OUT, H, W)

    # bf16 MXU inputs vs f32 reference -> relaxed tolerance.
    assert jnp.allclose(out, ref, atol=3e-2, rtol=3e-2)
    # No padded-lane leakage: exact output shape, every element checked above.

    print("KERNEL_OK")
</pallas_src>

<mosaic_0001>
module attributes {stable_mosaic.version = 11 : i64} {
  func.func @_fused_1x1_convs_kernel(%arg0: i32, %arg1: i32, %arg2: memref<1x384x128xf32, #tpu.memory_space<vmem>>, %arg3: memref<64x384xbf16, #tpu.memory_space<vmem>>, %arg4: memref<64x1xf32, #tpu.memory_space<vmem>>, %arg5: memref<256x64xbf16, #tpu.memory_space<vmem>>, %arg6: memref<256x1xf32, #tpu.memory_space<vmem>>, %arg7: memref<1x256x128xf32, #tpu.memory_space<vmem>>) attributes {dimension_semantics = [#tpu.dimension_semantics<parallel>, #tpu.dimension_semantics<parallel>], iteration_bounds = array<i64: 1, 2>, scalar_prefetch = 0 : i64, scratch_operands = 0 : i64, tpu.core_type = #tpu.core_type<tc>, window_params = [{transform_indices = @transform_0, window_bounds = array<i64: 1, 384, 128>}, {pipeline_mode = #tpu.pipeline_mode<synchronous>, transform_indices = @transform_1, window_bounds = array<i64: 64, 384>}, {pipeline_mode = #tpu.pipeline_mode<synchronous>, transform_indices = @transform_2, window_bounds = array<i64: 64, 1>}, {pipeline_mode = #tpu.pipeline_mode<synchronous>, transform_indices = @transform_3, window_bounds = array<i64: 256, 64>}, {pipeline_mode = #tpu.pipeline_mode<synchronous>, transform_indices = @transform_4, window_bounds = array<i64: 256, 1>}, {transform_indices = @transform_5, window_bounds = array<i64: 1, 256, 128>}]} {
    %c0 = arith.constant 0 : index
    %c0_0 = arith.constant 0 : index
    %c0_1 = arith.constant 0 : index
    %0 = vector.load %arg2[%c0, %c0_0, %c0_1] : memref<1x384x128xf32, #tpu.memory_space<vmem>>, vector<1x384x128xf32>
    %1 = vector.shape_cast %0 : vector<1x384x128xf32> to vector<384x128xf32>
    %2 = arith.truncf %1 : vector<384x128xf32> to vector<384x128xbf16>
    %c0_2 = arith.constant 0 : index
    %c0_3 = arith.constant 0 : index
    %3 = vector.load %arg3[%c0_2, %c0_3] : memref<64x384xbf16, #tpu.memory_space<vmem>>, vector<64x384xbf16>
    %cst = arith.constant dense<0.000000e+00> : vector<64x128xf32>
    %4 = tpu.matmul %3, %2, %cst {dimension_numbers = #tpu.dot_dimension_numbers<[1], [0], [0], [1], [0, 0, 1, 1], [], []>} : vector<64x384xbf16>, vector<384x128xbf16>, vector<64x128xf32> -> vector<64x128xf32>
    %c0_4 = arith.constant 0 : index
    %c0_5 = arith.constant 0 : index
    %5 = vector.load %arg4[%c0_4, %c0_5] : memref<64x1xf32, #tpu.memory_space<vmem>>, vector<64x1xf32>
    %6 = vector.broadcast %5 : vector<64x1xf32> to vector<64x128xf32>
    %7 = arith.addf %4, %6 : vector<64x128xf32>
    %cst_6 = arith.constant 0.000000e+00 : f32
    %8 = vector.broadcast %cst_6 : f32 to vector<64x128xf32>
    %9 = arith.maximumf %7, %8 : vector<64x128xf32>
    %c0_7 = arith.constant 0 : index
    %c0_8 = arith.constant 0 : index
    %10 = vector.load %arg5[%c0_7, %c0_8] : memref<256x64xbf16, #tpu.memory_space<vmem>>, vector<256x64xbf16>
    %11 = arith.truncf %9 : vector<64x128xf32> to vector<64x128xbf16>
    %cst_9 = arith.constant dense<0.000000e+00> : vector<256x128xf32>
    %12 = tpu.matmul %10, %11, %cst_9 {dimension_numbers = #tpu.dot_dimension_numbers<[1], [0], [0], [1], [0, 0, 1, 1], [], []>} : vector<256x64xbf16>, vector<64x128xbf16>, vector<256x128xf32> -> vector<256x128xf32>
    %c0_10 = arith.constant 0 : index
    %c0_11 = arith.constant 0 : index
    %13 = vector.load %arg6[%c0_10, %c0_11] : memref<256x1xf32, #tpu.memory_space<vmem>>, vector<256x1xf32>
    %14 = vector.broadcast %13 : vector<256x1xf32> to vector<256x128xf32>
    %15 = arith.addf %12, %14 : vector<256x128xf32>
    %cst_12 = arith.constant 0.000000e+00 : f32
    %16 = vector.broadcast %cst_12 : f32 to vector<256x128xf32>
    %17 = arith.maximumf %15, %16 : vector<256x128xf32>
    %c0_13 = arith.constant 0 : index
    %c0_14 = arith.constant 0 : index
    %c0_15 = arith.constant 0 : index
    %18 = vector.load %arg7[%c0_13, %c0_14, %c0_15] : memref<1x256x128xf32, #tpu.memory_space<vmem>>, vector<1x256x128xf32>
    %19 = vector.shape_cast %18 : vector<1x256x128xf32> to vector<256x128xf32>
    %20 = vector.shape_cast %17 : vector<256x128xf32> to vector<1x256x128xf32>
    tpu.vector_store %arg7[%c0_13, %c0_14, %c0_15], %20 {strides = array<i32>} : memref<1x256x128xf32, #tpu.memory_space<vmem>>, vector<1x256x128xf32>,
    return
  }
  func.func @transform_0(%arg0: i32, %arg1: i32) -> (i32, i32, i32) {
    %c0_i32 = arith.constant 0 : i32
    %c0_i32_0 = arith.constant 0 : i32
    return %arg0, %c0_i32, %arg1 : i32, i32, i32
  }
  func.func @transform_1(%arg0: i32, %arg1: i32) -> (i32, i32) {
    %c0_i32 = arith.constant 0 : i32
    %c0_i32_0 = arith.constant 0 : i32
    %c0_i32_1 = arith.constant 0 : i32
    return %c0_i32, %c0_i32_0 : i32, i32
  }
  func.func @transform_2(%arg0: i32, %arg1: i32) -> (i32, i32) {
    %c0_i32 = arith.constant 0 : i32
    %c0_i32_0 = arith.constant 0 : i32
    %c0_i32_1 = arith.constant 0 : i32
    return %c0_i32, %c0_i32_0 : i32, i32
  }
  func.func @transform_3(%arg0: i32, %arg1: i32) -> (i32, i32) {
    %c0_i32 = arith.constant 0 : i32
    %c0_i32_0 = arith.constant 0 : i32
    %c0_i32_1 = arith.constant 0 : i32
    return %c0_i32, %c0_i32_0 : i32, i32
  }
  func.func @transform_4(%arg0: i32, %arg1: i32) -> (i32, i32) {
    %c0_i32 = arith.constant 0 : i32
    %c0_i32_0 = arith.constant 0 : i32
    %c0_i32_1 = arith.constant 0 : i32
    return %c0_i32, %c0_i32_0 : i32, i32
  }
  func.func @transform_5(%arg0: i32, %arg1: i32) -> (i32, i32, i32) {
    %c0_i32 = arith.constant 0 : i32
    %c0_i32_0 = arith.constant 0 : i32
    return %arg0, %c0_i32, %arg1 : i32, i32, i32
  }
}

</mosaic_0001>

<llo_original>
// kernel: fused_1x1_convs.1
$region0: #{fused_1x1_convs.1}
  #allocation0 [shape = 'u32[]', space=smem, size = 0x4, offset = 0x4, fixed_abs, tag = 'smem constant byte address 0x4 - core index']
  #allocation1 [shape = 'u32[72,128]{1,0:T(1,128)}', space=vmem, size = 0x9000, scoped, tag = 'internal scratch']
  %s0 = inlined_call_operand.vmem [shape: f32[1,384,169], index: 0, kind: input, shape index: {}]
  %s1 = inlined_call_operand.vmem [shape: bf16[64,384], index: 1, kind: input, shape index: {}]
  %s2 = inlined_call_operand.vmem [shape: f32[64,1], index: 2, kind: input, shape index: {}]
  %s3 = inlined_call_operand.vmem [shape: bf16[256,64], index: 3, kind: input, shape index: {}]
  %s4 = inlined_call_operand.vmem [shape: f32[256,1], index: 4, kind: input, shape index: {}]
  %s5 = inlined_call_operand.vmem [shape: f32[1,256,169], index: 5, kind: output, shape index: {}]
  %s6 = sld [smem:[#allocation0]]
  $region125: #{fused_1x1_convs.1} parent=0
    _
  %s8 = ssub.s32 1, %s6
  %s9 = scalar_select 0, %s8, %s6
  $region1: #{fused_1x1_convs.1} parent=0
    #allocation2 [shape = 'u8[393216]{0}', space=vmem, size = 0x60000, scoped, tag = 'input window, operand 0']
    #allocation3 [shape = 'u8[262144]{0}', space=vmem, size = 0x40000, scoped, tag = 'output window, operand 0']
    loop: start=0, step=1, limit=4
    $region2: #{fused_1x1_convs.1} parent=1 // loop_pre_header
      _
    $region3: #{fused_1x1_convs.1} parent=1 // loop_header
      %s11 = sphi 0, %s15
      %p12 = scmp.ge.s32.totalorder %s11, 4
      %s18 = sphi 0, %s30
      %s19 = sphi 0, %s26
      %s20 = sphi 0, %s18
      %s21 = sphi 0, %s19
      %s22 = sphi 0, %s20
      %s23 = sphi 0, %s21
      %s35 = sphi 0, %s37
      %s38 = sphi 0, %s35
      %s39 = sphi 0, %s38
      %s55 = sphi 0, %s39
      %s59 = sphi 0, %s59
      %s61 = sphi 0, %s59
      %s62 = sphi 0, %s61
      %s76 = sphi 0, %s62
      %s80 = sphi 0, %s80
      %s82 = sphi 0, %s80
      %s83 = sphi 0, %s82
      %s97 = sphi 0, %s83
      %s101 = sphi 0, %s101
      %s103 = sphi 0, %s101
      %s104 = sphi 0, %s103
      %s118 = sphi 0, %s104
      %s122 = sphi 0, %s122
      %s124 = sphi 0, %s122
      %s125 = sphi 0, %s124
      %s139 = sphi 0, %s125
      %s147 = sphi 0, %s149
      %s150 = sphi 0, %s147
      %s151 = sphi 0, %s150
      %s167 = sphi 0, %s151
    $region4: #{fused_1x1_convs.1} parent=1 // loop_header_branch
      %14 = sbr.rel (%p12) target = $region8
    $region5: #{fused_1x1_convs.1} parent=1 // loop_body
      %s16 = ssub.s32 %s11, 1
      %s17 = ssub.s32 %s11, 2
      %s24 = sadd.s32 1, %s19
      %p25 = scmp.ge.s32.totalorder %s24, 2
      %s26 = scalar_select %p25, 0, %s24
      %s27 = sadd.s32 1, %s18
      %s28 = scalar_select %p25, %s27, %s18
      %p29 = scmp.ge.s32.totalorder %s28, 1
      %s30 = scalar_select %p29, 0, %s28
      %s31 = ssub.s32 %s18, %s30
      %s32 = ssub.s32 %s19, %s26
      %s33 = sor.u32 %s31, %s32
      %p34 = scmp.eq.s32.totalorder %s33, 0
      %s36 = sadd.s32 %s35, 1
      %s37 = scalar_select %p34, %s35, %s36
      %p40 = pneg %p34
      %p41 = scmp.eq.s32.totalorder %s11, 1
      %p42 = por %p40, %p41
      %p43 = scmp.ne.s32.totalorder %s35, %s38
      %p44 = scmp.eq.s32.totalorder %s11, 0
      %p45 = por %p43, %p44
      %p46 = scmp.ne.s32.totalorder %s35, %s38
      %p47 = scmp.eq.s32.totalorder %s16, 1
      %p48 = por %p46, %p47
      %p49 = scmp.ne.s32.totalorder %s38, %s39
      %p50 = scmp.eq.s32.totalorder %s16, 0
      %p51 = por %p49, %p50
      %p52 = scmp.ne.s32.totalorder %s38, %s39
      %p53 = scmp.eq.s32.totalorder %s17, 1
      %p54 = por %p52, %p53
      %p56 = scmp.ne.s32.totalorder %s39, %s55
      %p57 = scmp.eq.s32.totalorder %s17, 0
      %p58 = por %p56, %p57
      %s60 = sadd.s32 %s59, 1
      %p63 = scmp.eq.s32.totalorder %s11, 1
      %p64 = scmp.ne.s32.totalorder %s59, %s61
      %p65 = scmp.eq.s32.totalorder %s11, 0
      %p66 = por %p64, %p65
      %p67 = scmp.ne.s32.totalorder %s59, %s61
      %p68 = scmp.eq.s32.totalorder %s16, 1
      %p69 = por %p67, %p68
      %p70 = scmp.ne.s32.totalorder %s61, %s62
      %p71 = scmp.eq.s32.totalorder %s16, 0
      %p72 = por %p70, %p71
      %p73 = scmp.ne.s32.totalorder %s61, %s62
      %p74 = scmp.eq.s32.totalorder %s17, 1
      %p75 = por %p73, %p74
      %p77 = scmp.ne.s32.totalorder %s62, %s76
      %p78 = scmp.eq.s32.totalorder %s17, 0
      %p79 = por %p77, %p78
      %s81 = sadd.s32 %s80, 1
      %p84 = scmp.eq.s32.totalorder %s11, 1
      %p85 = scmp.ne.s32.totalorder %s80, %s82
      %p86 = scmp.eq.s32.totalorder %s11, 0
      %p87 = por %p85, %p86
      %p88 = scmp.ne.s32.totalorder %s80, %s82
      %p89 = scmp.eq.s32.totalorder %s16, 1
      %p90 = por %p88, %p89
      %p91 = scmp.ne.s32.totalorder %s82, %s83
      %p92 = scmp.eq.s32.totalorder %s16, 0
      %p93 = por %p91, %p92
      %p94 = scmp.ne.s32.totalorder %s82, %s83
      %p95 = scmp.eq.s32.totalorder %s17, 1
      %p96 = por %p94, %p95
      %p98 = scmp.ne.s32.totalorder %s83, %s97
      %p99 = scmp.eq.s32.totalorder %s17, 0
      %p100 = por %p98, %p99
      %s102 = sadd.s32 %s101, 1
      %p105 = scmp.eq.s32.totalorder %s11, 1
      %p106 = scmp.ne.s32.totalorder %s101, %s103
      %p107 = scmp.eq.s32.totalorder %s11, 0
      %p108 = por %p106, %p107
      %p109 = scmp.ne.s32.totalorder %s101, %s103
      %p110 = scmp.eq.s32.totalorder %s16, 1
      %p111 = por %p109, %p110
      %p112 = scmp.ne.s32.totalorder %s103, %s104
      %p113 = scmp.eq.s32.totalorder %s16, 0
      %p114 = por %p112, %p113
      %p115 = scmp.ne.s32.totalorder %s103, %s104
      %p116 = scmp.eq.s32.totalorder %s17, 1
      %p117 = por %p115, %p116
      %p119 = scmp.ne.s32.totalorder %s104, %s118
      %p120 = scmp.eq.s32.totalorder %s17, 0
      %p121 = por %p119, %p120
      %s123 = sadd.s32 %s122, 1
      %p126 = scmp.eq.s32.totalorder %s11, 1
      %p127 = scmp.ne.s32.totalorder %s122, %s124
      %p128 = scmp.eq.s32.totalorder %s11, 0
      %p129 = por %p127, %p128
      %p130 = scmp.ne.s32.totalorder %s122, %s124
      %p131 = scmp.eq.s32.totalorder %s16, 1
      %p132 = por %p130, %p131
      %p133 = scmp.ne.s32.totalorder %s124, %s125
      %p134 = scmp.eq.s32.totalorder %s16, 0
      %p135 = por %p133, %p134
      %p136 = scmp.ne.s32.totalorder %s124, %s125
      %p137 = scmp.eq.s32.totalorder %s17, 1
      %p138 = por %p136, %p137
      %p140 = scmp.ne.s32.totalorder %s125, %s139
      %p141 = scmp.eq.s32.totalorder %s17, 0
      %p142 = por %p140, %p141
      %s143 = ssub.s32 %s18, %s30
      %s144 = ssub.s32 %s19, %s26
      %s145 = sor.u32 %s143, %s144
      %p146 = scmp.eq.s32.totalorder %s145, 0
      %s148 = sadd.s32 %s147, 1
      %s149 = scalar_select %p146, %s147, %s148
      %p152 = pneg %p146
      %p153 = scmp.eq.s32.totalorder %s11, 1
      %p154 = por %p152, %p153
      %p155 = scmp.ne.s32.totalorder %s147, %s150
      %p156 = scmp.eq.s32.totalorder %s11, 0
      %p157 = por %p155, %p156
      %p158 = scmp.ne.s32.totalorder %s147, %s150
      %p159 = scmp.eq.s32.totalorder %s16, 1
      %p160 = por %p158, %p159
      %p161 = scmp.ne.s32.totalorder %s150, %s151
      %p162 = scmp.eq.s32.totalorder %s16, 0
      %p163 = por %p161, %p162
      %p164 = scmp.ne.s32.totalorder %s150, %s151
      %p165 = scmp.eq.s32.totalorder %s17, 1
      %p166 = por %p164, %p165
      %p168 = scmp.ne.s32.totalorder %s151, %s167
      %p169 = scmp.eq.s32.totalorder %s17, 0
      %p170 = por %p168, %p169
      %p171 = scmp.le.s32.totalorder 1, %s11
      %p172 = scmp.lt.s32.totalorder %s11, 3
      %p173 = pnand %p171, %p172
      %p174 = pneg %p173
      // Predicated region
      $region9: #{fused_1x1_convs.1} parent=5 // pred_check
        _
      $region10: #{fused_1x1_convs.1} parent=5 // pred_check_branch
        %176 = sbr.rel (%p173) target = $region12
      $region11: #{fused_1x1_convs.1} parent=5 // pred_region
        %s177 = ssub.s32 %s11, 1
        // Predicated region
        $region13: #{fused_1x1_convs.1} parent=11 // pred_check
          %p178 = pneg %p72
        $region14: #{fused_1x1_convs.1} parent=11 // pred_check_branch
          %180 = sbr.rel (%p178) target = $region16
        $region15: #{fused_1x1_convs.1} parent=11 // pred_region
          _
        $region16: #{fused_1x1_convs.1} parent=11 // pred_fallthru
          _
        // Predicated region
        $region17: #{fused_1x1_convs.1} parent=11 // pred_check
          %p181 = pneg %p93
        $region18: #{fused_1x1_convs.1} parent=11 // pred_check_branch
          %183 = sbr.rel (%p181) target = $region20
        $region19: #{fused_1x1_convs.1} parent=11 // pred_region
          _
        $region20: #{fused_1x1_convs.1} parent=11 // pred_fallthru
          _
        // Predicated region
        $region21: #{fused_1x1_convs.1} parent=11 // pred_check
          %p184 = pneg %p114
        $region22: #{fused_1x1_convs.1} parent=11 // pred_check_branch
          %186 = sbr.rel (%p184) target = $region24
        $region23: #{fused_1x1_convs.1} parent=11 // pred_region
          _
        $region24: #{fused_1x1_convs.1} parent=11 // pred_fallthru
          _
        // Predicated region
        $region25: #{fused_1x1_convs.1} parent=11 // pred_check
          %p187 = pneg %p135
        $region26: #{fused_1x1_convs.1} parent=11 // pred_check_branch
          %189 = sbr.rel (%p187) target = $region28
        $region27: #{fused_1x1_convs.1} parent=11 // pred_region
          _
        $region28: #{fused_1x1_convs.1} parent=11 // pred_fallthru
          _
      $region12: #{fused_1x1_convs.1} parent=5 // pred_fallthru
        _
      %p190 = scmp.lt.s32.totalorder %s11, 2
      // Predicated region
      $region29: #{fused_1x1_convs.1} parent=5 // pred_check
        %p191 = pneg %p190
      $region30: #{fused_1x1_convs.1} parent=5 // pred_check_branch
        %193 = sbr.rel (%p191) target = $region32
      $region31: #{fused_1x1_convs.1} parent=5 // pred_region
        // Predicated region
        $region33: #{fused_1x1_convs.1} parent=31 // pred_check
          %p194 = pneg %p45
        $region34: #{fused_1x1_convs.1} parent=31 // pred_check_branch
          %196 = sbr.rel (%p194) target = $region36
        $region35: #{fused_1x1_convs.1} parent=31 // pred_region
          %s197 = sand.u32 %s35, 1
          %s198 = sand.u32 %s35, 1
          %s199 = smul.addr %s198, 384
          %s200 = scalar_lea.vmem [#allocation2], %s199
          %s201 = smul.addr %s18, 96
          %s202 = sadd.s32 %s19, %s201
          %s203 = smul.addr %s202, 8
          %s204 = scalar_lea.vmem %s0, %s203
          // Predicated region
          $region37: #{fused_1x1_convs.1} parent=35 // pred_check
            _
          $region38: #{fused_1x1_convs.1} parent=35 // pred_check_branch
            %206 = sbr.rel (0) target = $region40
          $region39: #{fused_1x1_convs.1} parent=35 // pred_region
            // Predicated region
            $region41: #{fused_1x1_convs.1} parent=39 // pred_check
              _
            $region42: #{fused_1x1_convs.1} parent=39 // pred_check_branch
              %208 = sbr.rel (0) target = $region44
            $region43: #{fused_1x1_convs.1} parent=39 // pred_region
              // Predicated region
              $region56: #{fused_1x1_convs.1} parent=43 // pred_check
                _
              $region57: #{fused_1x1_convs.1} parent=43 // pred_check_branch
                %318 = sbr.rel (0) target = $region59
              $region58: #{fused_1x1_convs.1} parent=43 // pred_region
                loop: start=0, step=1, limit=1
                $region60: #{fused_1x1_convs.1} parent=58 // loop_pre_header
                  _
                $region61: #{fused_1x1_convs.1} parent=58 // loop_header
                  %s320 = sphi 0, %s324
                  %p321 = scmp.ge.s32.totalorder %s320, 1
                  %s325 = sphi %s204, %s204
                  %s326 = sphi %s200, %s200
                $region62: #{fused_1x1_convs.1} parent=58 // loop_header_branch
                  %323 = sbr.rel (%p321) target = $region66
                $region63: #{fused_1x1_convs.1} parent=58 // loop_body
                  %v327 = vld [vmem:[%s325] sm:$0xff]
                  %328 = vst [vmem:[%s326] sm:$0xff] %v327
                  %v329 = vld [vmem:[%s325 + $0x10] sm:$0xff]
                  %330 = vst [vmem:[%s326 + $0x8] sm:$0xff] %v329
                  %v331 = vld [vmem:[%s325 + $0x20] sm:$0xff]
                  %332 = vst [vmem:[%s326 + $0x10] sm:$0xff] %v331
                  %v333 = vld [vmem:[%s325 + $0x30] sm:$0xff]
                  %334 = vst [vmem:[%s326 + $0x18] sm:$0xff] %v333
                  %v335 = vld [vmem:[%s325 + $0x40] sm:$0xff]
                  %336 = vst [vmem:[%s326 + $0x20] sm:$0xff] %v335
                  %v337 = vld [vmem:[%s325 + $0x50] sm:$0xff]
                  %338 = vst [vmem:[%s326 + $0x28] sm:$0xff] %v337
                  %v339 = vld [vmem:[%s325 + $0x60] sm:$0xff]
                  %340 = vst [vmem:[%s326 + $0x30] sm:$0xff] %v339
                  %v341 = vld [vmem:[%s325 + $0x70] sm:$0xff]
                  %342 = vst [vmem:[%s326 + $0x38] sm:$0xff] %v341
                  %v343 = vld [vmem:[%s325 + $0x80] sm:$0xff]
                  %344 = vst [vmem:[%s326 + $0x40] sm:$0xff] %v343
                  %v345 = vld [vmem:[%s325 + $0x90] sm:$0xff]
                  %346 = vst [vmem:[%s326 + $0x48] sm:$0xff] %v345
                  %v347 = vld [vmem:[%s325 + $0xa0] sm:$0xff]
                  %348 = vst [vmem:[%s326 + $0x50] sm:$0xff] %v347
                  %v349 = vld [vmem:[%s325 + $0xb0] sm:$0xff]
                  %350 = vst [vmem:[%s326 + $0x58] sm:$0xff] %v349
                  %v351 = vld [vmem:[%s325 + $0xc0] sm:$0xff]
                  %352 = vst [vmem:[%s326 + $0x60] sm:$0xff] %v351
                  %v353 = vld [vmem:[%s325 + $0xd0] sm:$0xff]
                  %354 = vst [vmem:[%s326 + $0x68] sm:$0xff] %v353
                  %v355 = vld [vmem:[%s325 + $0xe0] sm:$0xff]
                  %356 = vst [vmem:[%s326 + $0x70] sm:$0xff] %v355
                  %v357 = vld [vmem:[%s325 + $0xf0] sm:$0xff]
                  %358 = vst [vmem:[%s326 + $0x78] sm:$0xff] %v357
                  %v359 = vld [vmem:[%s325 + $0x100] sm:$0xff]
                  %360 = vst [vmem:[%s326 + $0x80] sm:$0xff] %v359
                  %v361 = vld [vmem:[%s325 + $0x110] sm:$0xff]
                  %362 = vst [vmem:[%s326 + $0x88] sm:$0xff] %v361
                  %v363 = vld [vmem:[%s325 + $0x120] sm:$0xff]
                  %364 = vst [vmem:[%s326 + $0x90] sm:$0xff] %v363
                  %v365 = vld [vmem:[%s325 + $0x130] sm:$0xff]
                  %366 = vst [vmem:[%s326 + $0x98] sm:$0xff] %v365
                  %v367 = vld [vmem:[%s325 + $0x140] sm:$0xff]
                  %368 = vst [vmem:[%s326 + $0xa0] sm:$0xff] %v367
                  %v369 = vld [vmem:[%s325 + $0x150] sm:$0xff]
                  %370 = vst [vmem:[%s326 + $0xa8] sm:$0xff] %v369
                  %v371 = vld [vmem:[%s325 + $0x160] sm:$0xff]
                  %372 = vst [vmem:[%s326 + $0xb0] sm:$0xff] %v371
                  %v373 = vld [vmem:[%s325 + $0x170] sm:$0xff]
                  %374 = vst [vmem:[%s326 + $0xb8] sm:$0xff] %v373
                  %v375 = vld [vmem:[%s325 + $0x180] sm:$0xff]
                  %376 = vst [vmem:[%s326 + $0xc0] sm:$0xff] %v375
                  %v377 = vld [vmem:[%s325 + $0x190] sm:$0xff]
                  %378 = vst [vmem:[%s326 + $0xc8] sm:$0xff] %v377
                  %v379 = vld [vmem:[%s325 + $0x1a0] sm:$0xff]
                  %380 = vst [vmem:[%s326 + $0xd0] sm:$0xff] %v379
                  %v381 = vld [vmem:[%s325 + $0x1b0] sm:$0xff]
                  %382 = vst [vmem:[%s326 + $0xd8] sm:$0xff] %v381
                  %v383 = vld [vmem:[%s325 + $0x1c0] sm:$0xff]
                  %384 = vst [vmem:[%s326 + $0xe0] sm:$0xff] %v383
                  %v385 = vld [vmem:[%s325 + $0x1d0] sm:$0xff]
                  %386 = vst [vmem:[%s326 + $0xe8] sm:$0xff] %v385
                  %v387 = vld [vmem:[%s325 + $0x1e0] sm:$0xff]
                  %388 = vst [vmem:[%s326 + $0xf0] sm:$0xff] %v387
                  %v389 = vld [vmem:[%s325 + $0x1f0] sm:$0xff]
                  %390 = vst [vmem:[%s326 + $0xf8] sm:$0xff] %v389
                  %v391 = vld [vmem:[%s325 + $0x200] sm:$0xff]
                  %392 = vst [vmem:[%s326 + $0x100] sm:$0xff] %v391
                  %v393 = vld [vmem:[%s325 + $0x210] sm:$0xff]
                  %394 = vst [vmem:[%s326 + $0x108] sm:$0xff] %v393
                  %v395 = vld [vmem:[%s325 + $0x220] sm:$0xff]
                  %396 = vst [vmem:[%s326 + $0x110] sm:$0xff] %v395
                  %v397 = vld [vmem:[%s325 + $0x230] sm:$0xff]
                  %398 = vst [vmem:[%s326 + $0x118] sm:$0xff] %v397
                  %v399 = vld [vmem:[%s325 + $0x240] sm:$0xff]
                  %400 = vst [vmem:[%s326 + $0x120] sm:$0xff] %v399
                  %v401 = vld [vmem:[%s325 + $0x250] sm:$0xff]
                  %402 = vst [vmem:[%s326 + $0x128] sm:$0xff] %v401
                  %v403 = vld [vmem:[%s325 + $0x260] sm:$0xff]
                  %404 = vst [vmem:[%s326 + $0x130] sm:$0xff] %v403
                  %v405 = vld [vmem:[%s325 + $0x270] sm:$0xff]
                  %406 = vst [vmem:[%s326 + $0x138] sm:$0xff] %v405
                  %v407 = vld [vmem:[%s325 + $0x280] sm:$0xff]
                  %408 = vst [vmem:[%s326 + $0x140] sm:$0xff] %v407
                  %v409 = vld [vmem:[%s325 + $0x290] sm:$0xff]
                  %410 = vst [vmem:[%s326 + $0x148] sm:$0xff] %v409
                  %v411 = vld [vmem:[%s325 + $0x2a0] sm:$0xff]
                  %412 = vst [vmem:[%s326 + $0x150] sm:$0xff] %v411
                  %v413 = vld [vmem:[%s325 + $0x2b0] sm:$0xff]
                  %414 = vst [vmem:[%s326 + $0x158] sm:$0xff] %v413
                  %v415 = vld [vmem:[%s325 + $0x2c0] sm:$0xff]
                  %416 = vst [vmem:[%s326 + $0x160] sm:$0xff] %v415
                  %v417 = vld [vmem:[%s325 + $0x2d0] sm:$0xff]
                  %418 = vst [vmem:[%s326 + $0x168] sm:$0xff] %v417
                  %v419 = vld [vmem:[%s325 + $0x2e0] sm:$0xff]
                  %420 = vst [vmem:[%s326 + $0x170] sm:$0xff] %v419
                  %v421 = vld [vmem:[%s325 + $0x2f0] sm:$0xff]
                  %422 = vst [vmem:[%s326 + $0x178] sm:$0xff] %v421
                $region64: #{fused_1x1_convs.1} parent=58 // loop_footer
                  %s324 = sadd.s32 1, %s320
                $region65: #{fused_1x1_convs.1} parent=58 // loop_footer_branch
                  %319 = sbr.rel target = $region61
                $region66: #{fused_1x1_convs.1} parent=58 // loop_exit
                  _
              $region59: #{fused_1x1_convs.1} parent=43 // pred_fallthru
                _
              // Predicated region
              $region67: #{fused_1x1_convs.1} parent=43 // pred_check
                _
              $region68: #{fused_1x1_convs.1} parent=43 // pred_check_branch
                %424 = sbr.rel target = $region70
              $region69: #{fused_1x1_convs.1} parent=43 // pred_region
                _
              $region70: #{fused_1x1_convs.1} parent=43 // pred_fallthru
                _
            $region44: #{fused_1x1_convs.1} parent=39 // pred_fallthru
              _
            // Predicated region
            $region45: #{fused_1x1_convs.1} parent=39 // pred_check
              _
            $region46: #{fused_1x1_convs.1} parent=39 // pred_check_branch
              %210 = sbr.rel target = $region48
            $region47: #{fused_1x1_convs.1} parent=39 // pred_region
              %s212 = ssub.s32 256, 1
              loop: start=0, step=1, limit=1
              $region49: #{fused_1x1_convs.1} parent=47 // loop_pre_header
                _
              $region50: #{fused_1x1_convs.1} parent=47 // loop_header
                %s214 = sphi 0, %s218
                %p215 = scmp.ge.s32.totalorder %s214, 1
                %s219 = sphi %s204, %s204
                %s220 = sphi %s200, %s200
              $region51: #{fused_1x1_convs.1} parent=47 // loop_header_branch
                %217 = sbr.rel (%p215) target = $region55
              $region52: #{fused_1x1_convs.1} parent=47 // loop_body
                %v221 = vld [vmem:[%s219] sm:%s212]
                %222 = vst [vmem:[%s220] sm:%s212] %v221
                %v223 = vld [vmem:[%s219 + $0x10] sm:%s212]
                %224 = vst [vmem:[%s220 + $0x8] sm:%s212] %v223
                %v225 = vld [vmem:[%s219 + $0x20] sm:%s212]
                %226 = vst [vmem:[%s220 + $0x10] sm:%s212] %v225
                %v227 = vld [vmem:[%s219 + $0x30] sm:%s212]
                %228 = vst [vmem:[%s220 + $0x18] sm:%s212] %v227
                %v229 = vld [vmem:[%s219 + $0x40] sm:%s212]
                %230 = vst [vmem:[%s220 + $0x20] sm:%s212] %v229
                %v231 = vld [vmem:[%s219 + $0x50] sm:%s212]
                %232 = vst [vmem:[%s220 + $0x28] sm:%s212] %v231
                %v233 = vld [vmem:[%s219 + $0x60] sm:%s212]
                %234 = vst [vmem:[%s220 + $0x30] sm:%s212] %v233
                %v235 = vld [vmem:[%s219 + $0x70] sm:%s212]
                %236 = vst [vmem:[%s220 + $0x38] sm:%s212] %v235
                %v237 = vld [vmem:[%s219 + $0x80] sm:%s212]
                %238 = vst [vmem:[%s220 + $0x40] sm:%s212] %v237
                %v239 = vld [vmem:[%s219 + $0x90] sm:%s212]
                %240 = vst [vmem:[%s220 + $0x48] sm:%s212] %v239
                %v241 = vld [vmem:[%s219 + $0xa0] sm:%s212]
                %242 = vst [vmem:[%s220 + $0x50] sm:%s212] %v241
                %v243 = vld [vmem:[%s219 + $0xb0] sm:%s212]
                %244 = vst [vmem:[%s220 + $0x58] sm:%s212] %v243
                %v245 = vld [vmem:[%s219 + $0xc0] sm:%s212]
                %246 = vst [vmem:[%s220 + $0x60] sm:%s212] %v245
                %v247 = vld [vmem:[%s219 + $0xd0] sm:%s212]
                %248 = vst [vmem:[%s220 + $0x68] sm:%s212] %v247
                %v249 = vld [vmem:[%s219 + $0xe0] sm:%s212]
                %250 = vst [vmem:[%s220 + $0x70] sm:%s212] %v249
                %v251 = vld [vmem:[%s219 + $0xf0] sm:%s212]
                %252 = vst [vmem:[%s220 + $0x78] sm:%s212] %v251
                %v253 = vld [vmem:[%s219 + $0x100] sm:%s212]
                %254 = vst [vmem:[%s220 + $0x80] sm:%s212] %v253
                %v255 = vld [vmem:[%s219 + $0x110] sm:%s212]
                %256 = vst [vmem:[%s220 + $0x88] sm:%s212] %v255
                %v257 = vld [vmem:[%s219 + $0x120] sm:%s212]
                %258 = vst [vmem:[%s220 + $0x90] sm:%s212] %v257
                %v259 = vld [vmem:[%s219 + $0x130] sm:%s212]
                %260 = vst [vmem:[%s220 + $0x98] sm:%s212] %v259
                %v261 = vld [vmem:[%s219 + $0x140] sm:%s212]
                %262 = vst [vmem:[%s220 + $0xa0] sm:%s212] %v261
                %v263 = vld [vmem:[%s219 + $0x150] sm:%s212]
                %264 = vst [vmem:[%s220 + $0xa8] sm:%s212] %v263
                %v265 = vld [vmem:[%s219 + $0x160] sm:%s212]
                %266 = vst [vmem:[%s220 + $0xb0] sm:%s212] %v265
                %v267 = vld [vmem:[%s219 + $0x170] sm:%s212]
                %268 = vst [vmem:[%s220 + $0xb8] sm:%s212] %v267
                %v269 = vld [vmem:[%s219 + $0x180] sm:%s212]
                %270 = vst [vmem:[%s220 + $0xc0] sm:%s212] %v269
                %v271 = vld [vmem:[%s219 + $0x190] sm:%s212]
                %272 = vst [vmem:[%s220 + $0xc8] sm:%s212] %v271
                %v273 = vld [vmem:[%s219 + $0x1a0] sm:%s212]
                %274 = vst [vmem:[%s220 + $0xd0] sm:%s212] %v273
                %v275 = vld [vmem:[%s219 + $0x1b0] sm:%s212]
                %276 = vst [vmem:[%s220 + $0xd8] sm:%s212] %v275
                %v277 = vld [vmem:[%s219 + $0x1c0] sm:%s212]
                %278 = vst [vmem:[%s220 + $0xe0] sm:%s212] %v277
                %v279 = vld [vmem:[%s219 + $0x1d0] sm:%s212]
                %280 = vst [vmem:[%s220 + $0xe8] sm:%s212] %v279
                %v281 = vld [vmem:[%s219 + $0x1e0] sm:%s212]
                %282 = vst [vmem:[%s220 + $0xf0] sm:%s212] %v281
                %v283 = vld [vmem:[%s219 + $0x1f0] sm:%s212]
                %284 = vst [vmem:[%s220 + $0xf8] sm:%s212] %v283
                %v285 = vld [vmem:[%s219 + $0x200] sm:%s212]
                %286 = vst [vmem:[%s220 + $0x100] sm:%s212] %v285
                %v287 = vld [vmem:[%s219 + $0x210] sm:%s212]
                %288 = vst [vmem:[%s220 + $0x108] sm:%s212] %v287
                %v289 = vld [vmem:[%s219 + $0x220] sm:%s212]
                %290 = vst [vmem:[%s220 + $0x110] sm:%s212] %v289
                %v291 = vld [vmem:[%s219 + $0x230] sm:%s212]
                %292 = vst [vmem:[%s220 + $0x118] sm:%s212] %v291
                %v293 = vld [vmem:[%s219 + $0x240] sm:%s212]
                %294 = vst [vmem:[%s220 + $0x120] sm:%s212] %v293
                %v295 = vld [vmem:[%s219 + $0x250] sm:%s212]
                %296 = vst [vmem:[%s220 + $0x128] sm:%s212] %v295
                %v297 = vld [vmem:[%s219 + $0x260] sm:%s212]
                %298 = vst [vmem:[%s220 + $0x130] sm:%s212] %v297
                %v299 = vld [vmem:[%s219 + $0x270] sm:%s212]
                %300 = vst [vmem:[%s220 + $0x138] sm:%s212] %v299
                %v301 = vld [vmem:[%s219 + $0x280] sm:%s212]
                %302 = vst [vmem:[%s220 + $0x140] sm:%s212] %v301
                %v303 = vld [vmem:[%s219 + $0x290] sm:%s212]
                %304 = vst [vmem:[%s220 + $0x148] sm:%s212] %v303
                %v305 = vld [vmem:[%s219 + $0x2a0] sm:%s212]
                %306 = vst [vmem:[%s220 + $0x150] sm:%s212] %v305
                %v307 = vld [vmem:[%s219 + $0x2b0] sm:%s212]
                %308 = vst [vmem:[%s220 + $0x158] sm:%s212] %v307
                %v309 = vld [vmem:[%s219 + $0x2c0] sm:%s212]
                %310 = vst [vmem:[%s220 + $0x160] sm:%s212] %v309
                %v311 = vld [vmem:[%s219 + $0x2d0] sm:%s212]
                %312 = vst [vmem:[%s220 + $0x168] sm:%s212] %v311
                %v313 = vld [vmem:[%s219 + $0x2e0] sm:%s212]
                %314 = vst [vmem:[%s220 + $0x170] sm:%s212] %v313
                %v315 = vld [vmem:[%s219 + $0x2f0] sm:%s212]
                %316 = vst [vmem:[%s220 + $0x178] sm:%s212] %v315
              $region53: #{fused_1x1_convs.1} parent=47 // loop_footer
                %s218 = sadd.s32 1, %s214
              $region54: #{fused_1x1_convs.1} parent=47 // loop_footer_branch
                %213 = sbr.rel target = $region50
              $region55: #{fused_1x1_convs.1} parent=47 // loop_exit
                _
            $region48: #{fused_1x1_convs.1} parent=39 // pred_fallthru
              _
          $region40: #{fused_1x1_convs.1} parent=35 // pred_fallthru
            _
          %425 = vnop
        $region36: #{fused_1x1_convs.1} parent=31 // pred_fallthru
          _
      $region32: #{fused_1x1_convs.1} parent=5 // pred_fallthru
        _
      %p426 = scmp.le.s32.totalorder 1, %s11
      %p427 = scmp.lt.s32.totalorder %s11, 3
      %p428 = pnand %p426, %p427
      %p429 = pneg %p428
      // Predicated region
      $region71: #{fused_1x1_convs.1} parent=5 // pred_check
        _
      $region72: #{fused_1x1_convs.1} parent=5 // pred_check_branch
        %431 = sbr.rel (%p428) target = $region74
      $region73: #{fused_1x1_convs.1} parent=5 // pred_region
        %s432 = ssub.s32 %s11, 1
        %s433 = sand.u32 %s38, 1
        %s434 = sand.u32 %s38, 1
        %s435 = smul.addr %s434, 384
        %s436 = scalar_lea.vmem [#allocation2], %s435
        // Predicated region
        $region75: #{fused_1x1_convs.1} parent=73 // pred_check
          %p437 = pneg %p51
        $region76: #{fused_1x1_convs.1} parent=73 // pred_check_branch
          %439 = sbr.rel (%p437) target = $region78
        $region77: #{fused_1x1_convs.1} parent=73 // pred_region
          _
        $region78: #{fused_1x1_convs.1} parent=73 // pred_fallthru
          _
        %s440 = sand.u32 %s38, 1
        %s441 = sand.u32 %s38, 1
        %s442 = smul.addr %s441, 384
        %s443 = scalar_lea.vmem [#allocation2], %s442
        %p444 = pneg %p51
        %p445 = pneg %p48
        %p446 = pneg %p72
        %p447 = pneg %p69
        %p448 = pneg %p93
        %p449 = pneg %p90
        %p450 = pneg %p114
        %p451 = pneg %p111
        %p452 = pneg %p135
        %p453 = pneg %p132
        %p454 = pneg %p163
        %p455 = pneg %p160
        %s456 = sand.u32 %s150, 1
        %s457 = sand.u32 %s150, 1
        %s458 = smul.addr %s457, 256
        %s459 = scalar_lea.vmem [#allocation3], %s458
        %v461 = vld [vmem:[%s436] sm:$0xff]
        %v462 = vld [vmem:[%s436 + $0x8] sm:$0xff]
        %v463 = vld [vmem:[%s436 + $0x10] sm:$0xff]
        %v464 = vld [vmem:[%s436 + $0x18] sm:$0xff]
        %v465 = vld [vmem:[%s436 + $0x20] sm:$0xff]
        %v466 = vld [vmem:[%s436 + $0x28] sm:$0xff]
        %v467 = vld [vmem:[%s436 + $0x30] sm:$0xff]
        %v468 = vld [vmem:[%s436 + $0x38] sm:$0xff]
        %v469 = vld [vmem:[%s436 + $0x40] sm:$0xff]
        %v470 = vld [vmem:[%s436 + $0x48] sm:$0xff]
        %v471 = vld [vmem:[%s436 + $0x50] sm:$0xff]
        %v472 = vld [vmem:[%s436 + $0x58] sm:$0xff]
        %v473 = vld [vmem:[%s436 + $0x60] sm:$0xff]
        %v474 = vld [vmem:[%s436 + $0x68] sm:$0xff]
        %v475 = vld [vmem:[%s436 + $0x70] sm:$0xff]
        %v476 = vld [vmem:[%s436 + $0x78] sm:$0xff]
        %v477 = vld [vmem:[%s436 + $0x80] sm:$0xff]
        %v478 = vld [vmem:[%s436 + $0x88] sm:$0xff]
        %v479 = vld [vmem:[%s436 + $0x90] sm:$0xff]
        %v480 = vld [vmem:[%s436 + $0x98] sm:$0xff]
        %v481 = vld [vmem:[%s436 + $0xa0] sm:$0xff]
        %v482 = vld [vmem:[%s436 + $0xa8] sm:$0xff]
        %v483 = vld [vmem:[%s436 + $0xb0] sm:$0xff]
        %v484 = vld [vmem:[%s436 + $0xb8] sm:$0xff]
        %v485 = vld [vmem:[%s436 + $0xc0] sm:$0xff]
        %v486 = vld [vmem:[%s436 + $0xc8] sm:$0xff]
        %v487 = vld [vmem:[%s436 + $0xd0] sm:$0xff]
        %v488 = vld [vmem:[%s436 + $0xd8] sm:$0xff]
        %v489 = vld [vmem:[%s436 + $0xe0] sm:$0xff]
        %v490 = vld [vmem:[%s436 + $0xe8] sm:$0xff]
        %v491 = vld [vmem:[%s436 + $0xf0] sm:$0xff]
        %v492 = vld [vmem:[%s436 + $0xf8] sm:$0xff]
        %v493 = vld [vmem:[%s436 + $0x100] sm:$0xff]
        %v494 = vld [vmem:[%s436 + $0x108] sm:$0xff]
        %v495 = vld [vmem:[%s436 + $0x110] sm:$0xff]
        %v496 = vld [vmem:[%s436 + $0x118] sm:$0xff]
        %v497 = vld [vmem:[%s436 + $0x120] sm:$0xff]
        %v498 = vld [vmem:[%s436 + $0x128] sm:$0xff]
        %v499 = vld [vmem:[%s436 + $0x130] sm:$0xff]
        %v500 = vld [vmem:[%s436 + $0x138] sm:$0xff]
        %v501 = vld [vmem:[%s436 + $0x140] sm:$0xff]
        %v502 = vld [vmem:[%s436 + $0x148] sm:$0xff]
        %v503 = vld [vmem:[%s436 + $0x150] sm:$0xff]
        %v504 = vld [vmem:[%s436 + $0x158] sm:$0xff]
        %v505 = vld [vmem:[%s436 + $0x160] sm:$0xff]
        %v506 = vld [vmem:[%s436 + $0x168] sm:$0xff]
        %v507 = vld [vmem:[%s436 + $0x170] sm:$0xff]
        %v508 = vld [vmem:[%s436 + $0x178] sm:$0xff]
        %v509 = vpack.c.bf16 %v462, %v461
        %v510 = vpack.c.bf16 %v464, %v463
        %v511 = vpack.c.bf16 %v466, %v465
        %v512 = vpack.c.bf16 %v468, %v467
        %v513 = vpack.c.bf16 %v470, %v469
        %v514 = vpack.c.bf16 %v472, %v471
        %v515 = vpack.c.bf16 %v474, %v473
        %v516 = vpack.c.bf16 %v476, %v475
        %v517 = vpack.c.bf16 %v478, %v477
        %v518 = vpack.c.bf16 %v480, %v479
        %v519 = vpack.c.bf16 %v482, %v481
        %v520 = vpack.c.bf16 %v484, %v483
        %v521 = vpack.c.bf16 %v486, %v485
        %v522 = vpack.c.bf16 %v488, %v487
        %v523 = vpack.c.bf16 %v490, %v489
        %v524 = vpack.c.bf16 %v492, %v491
        %v525 = vpack.c.bf16 %v494, %v493
        %v526 = vpack.c.bf16 %v496, %v495
        %v527 = vpack.c.bf16 %v498, %v497
        %v528 = vpack.c.bf16 %v500, %v499
        %v529 = vpack.c.bf16 %v502, %v501
        %v530 = vpack.c.bf16 %v504, %v503
        %v531 = vpack.c.bf16 %v506, %v505
        %v532 = vpack.c.bf16 %v508, %v507
        %v533 = vld [vmem:[%s1] sm:$0xff]
        %v534 = vld [vmem:[%s1 + $0x8] sm:$0xf]
        %v535 = vld [vmem:[%s1 + $0xc] sm:$0xff]
        %v536 = vld [vmem:[%s1 + $0x14] sm:$0xf]
        %v537 = vld [vmem:[%s1 + $0x18] sm:$0xff]
        %v538 = vld [vmem:[%s1 + $0x20] sm:$0xf]
        %v539 = vld [vmem:[%s1 + $0x24] sm:$0xff]
        %v540 = vld [vmem:[%s1 + $0x2c] sm:$0xf]
        %v541 = vld [vmem:[%s1 + $0x30] sm:$0xff]
        %v542 = vld [vmem:[%s1 + $0x38] sm:$0xf]
        %v543 = vld [vmem:[%s1 + $0x3c] sm:$0xff]
        %v544 = vld [vmem:[%s1 + $0x44] sm:$0xf]
        %v545 = vld [vmem:[%s1 + $0x48] sm:$0xff]
        %v546 = vld [vmem:[%s1 + $0x50] sm:$0xf]
        %v547 = vld [vmem:[%s1 + $0x54] sm:$0xff]
        %v548 = vld [vmem:[%s1 + $0x5c] sm:$0xf]
        %v549 = vld [vmem:[%s2] sm:$0xff]
        %v550 = vld [vmem:[%s2 + $0x8] sm:$0xff]
        %v551 = vld [vmem:[%s2 + $0x10] sm:$0xff]
        %v552 = vld [vmem:[%s2 + $0x18] sm:$0xff]
        %v553 = vld [vmem:[%s2 + $0x20] sm:$0xff]
        %v554 = vld [vmem:[%s2 + $0x28] sm:$0xff]
        %v555 = vld [vmem:[%s2 + $0x30] sm:$0xff]
        %v556 = vld [vmem:[%s2 + $0x38] sm:$0xff]
        %558 = vset.pattern.permute.xlu0 0
        %559 = vperm.xlu0 %558, %v549
        %v560 = vpop.permute.xlu0 %559
        %563 = vset.pattern.permute.xlu0 0
        %564 = vperm.xlu0 %563, %v550
        %v565 = vpop.permute.xlu0 %564
        %568 = vset.pattern.permute.xlu0 0
        %569 = vperm.xlu0 %568, %v551
        %v570 = vpop.permute.xlu0 %569
        %573 = vset.pattern.permute.xlu0 0
        %574 = vperm.xlu0 %573, %v552
        %v575 = vpop.permute.xlu0 %574
        %578 = vset.pattern.permute.xlu0 0
        %579 = vperm.xlu0 %578, %v553
        %v580 = vpop.permute.xlu0 %579
        %583 = vset.pattern.permute.xlu0 0
        %584 = vperm.xlu0 %583, %v554
        %v585 = vpop.permute.xlu0 %584
        %588 = vset.pattern.permute.xlu0 0
        %589 = vperm.xlu0 %588, %v555
        %v590 = vpop.permute.xlu0 %589
        %593 = vset.pattern.permute.xlu0 0
        %594 = vperm.xlu0 %593, %v556
        %v595 = vpop.permute.xlu0 %594
        %v613 = vunpack.c.l.b16 %v533
        %v614 = vunpack.c.h.b16 %v533
        %v615 = vunpack.c.l.b16 %v534
        %v616 = vunpack.c.l.b16 %v535
        %v617 = vunpack.c.h.b16 %v535
        %v618 = vunpack.c.l.b16 %v536
        %v619 = vunpack.c.l.b16 %v537
        %v620 = vunpack.c.h.b16 %v537
        %v621 = vunpack.c.l.b16 %v538
        %v622 = vunpack.c.l.b16 %v539
        %v623 = vunpack.c.h.b16 %v539
        %v624 = vunpack.c.l.b16 %v540
        %v625 = vunpack.c.l.b16 %v541
        %v626 = vunpack.c.h.b16 %v541
        %v627 = vunpack.c.l.b16 %v542
        %v628 = vunpack.c.l.b16 %v543
        %v629 = vunpack.c.h.b16 %v543
        %v630 = vunpack.c.l.b16 %v544
        %v631 = vunpack.c.l.b16 %v545
        %v632 = vunpack.c.h.b16 %v545
        %v633 = vunpack.c.l.b16 %v546
        %v634 = vunpack.c.l.b16 %v547
        %v635 = vunpack.c.h.b16 %v547
        %v636 = vunpack.c.l.b16 %v548
        %v637 = vpack.c.b16 %v616, %v613
        %v638 = vpack.c.b16 %v617, %v614
        %v639 = vpack.c.b16 %v618, %v615
        %v640 = vpack.c.b16 %v622, %v619
        %v641 = vpack.c.b16 %v623, %v620
        %v642 = vpack.c.b16 %v624, %v621
        %v643 = vpack.c.b16 %v628, %v625
        %v644 = vpack.c.b16 %v629, %v626
        %v645 = vpack.c.b16 %v630, %v627
        %v646 = vpack.c.b16 %v634, %v631
        %v647 = vpack.c.b16 %v635, %v632
        %v648 = vpack.c.b16 %v636, %v633
        %661 = vmatpush.bf16.msra.mxu0 %v516
        %662 = vmatpush.bf16.msra.mxu0 %v515
        %663 = vmatpush.bf16.msra.mxu0 %v514
        %664 = vmatpush.bf16.msra.mxu0 %v513
        %665 = vmatpush.bf16.msra.mxu0 %v512
        %666 = vmatpush.bf16.msra.mxu0 %v511
        %667 = vmatpush.bf16.msra.mxu0 %v510
        %668 = vmatpush.bf16.msra.mxu0 %v509
        %669 = vmatmul.bf16.gmra.mxu0 %v637
        %v670 = vpop.f32.mrf.mxu0
        %v671 = vadd.f32 %v560, %v670
        %v672 = vpop.f32.mrf.mxu0
        %v673 = vadd.f32 %v565, %v672
        %674 = vmatmul.bf16.gmra.mxu0 %v640
        %v675 = vpop.f32.mrf.mxu0
        %v676 = vadd.f32 %v570, %v675
        %v677 = vpop.f32.mrf.mxu0
        %v678 = vadd.f32 %v575, %v677
        %679 = vmatmul.bf16.gmra.mxu0 %v643
        %v680 = vpop.f32.mrf.mxu0
        %v681 = vadd.f32 %v580, %v680
        %v682 = vpop.f32.mrf.mxu0
        %v683 = vadd.f32 %v585, %v682
        %684 = vmatmul.bf16.gmra.mxu0 %v646
        %v685 = vpop.f32.mrf.mxu0
        %v686 = vadd.f32 %v590, %v685
        %v687 = vpop.f32.mrf.mxu0
        %v688 = vadd.f32 %v595, %v687
        %689 = vdwg.mxu0
        %690 = vmatpush.bf16.msra.mxu0 %v524
        %691 = vmatpush.bf16.msra.mxu0 %v523
        %692 = vmatpush.bf16.msra.mxu0 %v522
        %693 = vmatpush.bf16.msra.mxu0 %v521
        %694 = vmatpush.bf16.msra.mxu0 %v520
        %695 = vmatpush.bf16.msra.mxu0 %v519
        %696 = vmatpush.bf16.msra.mxu0 %v518
        %697 = vmatpush.bf16.msra.mxu0 %v517
        %698 = vmatmul.bf16.gmra.mxu0 %v638
        %v699 = vpop.f32.mrf.mxu0
        %v700 = vadd.f32 %v671, %v699
        %v701 = vpop.f32.mrf.mxu0
        %v702 = vadd.f32 %v673, %v701
        %703 = vmatmul.bf16.gmra.mxu0 %v641
        %v704 = vpop.f32.mrf.mxu0
        %v705 = vadd.f32 %v676, %v704
        %v706 = vpop.f32.mrf.mxu0
        %v707 = vadd.f32 %v678, %v706
        %708 = vmatmul.bf16.gmra.mxu0 %v644
        %v709 = vpop.f32.mrf.mxu0
        %v710 = vadd.f32 %v681, %v709
        %v711 = vpop.f32.mrf.mxu0
        %v712 = vadd.f32 %v683, %v711
        %713 = vmatmul.bf16.gmra.mxu0 %v647
        %v714 = vpop.f32.mrf.mxu0
        %v715 = vadd.f32 %v686, %v714
        %v716 = vpop.f32.mrf.mxu0
        %v717 = vadd.f32 %v688, %v716
        %718 = vdwg.mxu0
        %719 = vmatpush.bf16.msra.mxu0 %v532
        %720 = vmatpush.bf16.msra.mxu0 %v531
        %721 = vmatpush.bf16.msra.mxu0 %v530
        %722 = vmatpush.bf16.msra.mxu0 %v529
        %723 = vmatpush.bf16.msra.mxu0 %v528
        %724 = vmatpush.bf16.msra.mxu0 %v527
        %725 = vmatpush.bf16.msra.mxu0 %v526
        %726 = vmatpush.bf16.msra.mxu0 %v525
        %727 = vmatmul.bf16.gmra.mxu0 %v639
        %v728 = vpop.f32.mrf.mxu0
        %v729 = vadd.f32 %v700, %v728
        %v730 = vpop.f32.mrf.mxu0
        %v731 = vadd.f32 %v702, %v730
        %732 = vmatmul.bf16.gmra.mxu0 %v642
        %v733 = vpop.f32.mrf.mxu0
        %v734 = vadd.f32 %v705, %v733
        %v735 = vpop.f32.mrf.mxu0
        %v736 = vadd.f32 %v707, %v735
        %737 = vmatmul.bf16.gmra.mxu0 %v645
        %v738 = vpop.f32.mrf.mxu0
        %v739 = vadd.f32 %v710, %v738
        %v740 = vpop.f32.mrf.mxu0
        %v741 = vadd.f32 %v712, %v740
        %742 = vmatmul.bf16.gmra.mxu0 %v648
        %v743 = vpop.f32.mrf.mxu0
        %v744 = vadd.f32 %v715, %v743
        %v745 = vpop.f32.mrf.mxu0
        %v746 = vadd.f32 %v717, %v745
        %747 = vdwg.mxu0
        %v748 = vmax.f32 %v729, 0.0
        %v749 = vmax.f32 %v731, 0.0
        %v750 = vmax.f32 %v734, 0.0
        %v751 = vmax.f32 %v736, 0.0
        %v752 = vmax.f32 %v739, 0.0
        %v753 = vmax.f32 %v741, 0.0
        %v754 = vmax.f32 %v744, 0.0
        %v755 = vmax.f32 %v746, 0.0
        %v756 = vld [vmem:[%s3] sm:$0xf]
        %v757 = vld [vmem:[%s3 + $0x4] sm:$0xf]
        %v758 = vld [vmem:[%s3 + $0x8] sm:$0xf]
        %v759 = vld [vmem:[%s3 + $0xc] sm:$0xf]
        %v760 = vld [vmem:[%s3 + $0x10] sm:$0xf]
        %v761 = vld [vmem:[%s3 + $0x14] sm:$0xf]
        %v762 = vld [vmem:[%s3 + $0x18] sm:$0xf]
        %v763 = vld [vmem:[%s3 + $0x1c] sm:$0xf]
        %v764 = vld [vmem:[%s3 + $0x20] sm:$0xf]
        %v765 = vld [vmem:[%s3 + $0x24] sm:$0xf]
        %v766 = vld [vmem:[%s3 + $0x28] sm:$0xf]
        %v767 = vld [vmem:[%s3 + $0x2c] sm:$0xf]
        %v768 = vld [vmem:[%s3 + $0x30] sm:$0xf]
        %v769 = vld [vmem:[%s3 + $0x34] sm:$0xf]
        %v770 = vld [vmem:[%s3 + $0x38] sm:$0xf]
        %v771 = vld [vmem:[%s3 + $0x3c] sm:$0xf]
        %v772 = vld [vmem:[%s3 + $0x40] sm:$0xf]
        %v773 = vld [vmem:[%s3 + $0x44] sm:$0xf]
        %v774 = vld [vmem:[%s3 + $0x48] sm:$0xf]
        %v775 = vld [vmem:[%s3 + $0x4c] sm:$0xf]
        %v776 = vld [vmem:[%s3 + $0x50] sm:$0xf]
        %v777 = vld [vmem:[%s3 + $0x54] sm:$0xf]
        %v778 = vld [vmem:[%s3 + $0x58] sm:$0xf]
        %v779 = vld [vmem:[%s3 + $0x5c] sm:$0xf]
        %v780 = vld [vmem:[%s3 + $0x60] sm:$0xf]
        %v781 = vld [vmem:[%s3 + $0x64] sm:$0xf]
        %v782 = vld [vmem:[%s3 + $0x68] sm:$0xf]
        %v783 = vld [vmem:[%s3 + $0x6c] sm:$0xf]
        %v784 = vld [vmem:[%s3 + $0x70] sm:$0xf]
        %v785 = vld [vmem:[%s3 + $0x74] sm:$0xf]
        %v786 = vld [vmem:[%s3 + $0x78] sm:$0xf]
        %v787 = vld [vmem:[%s3 + $0x7c] sm:$0xf]
        %v788 = vpack.c.bf16 %v749, %v748
        %v789 = vpack.c.bf16 %v751, %v750
        %v790 = vpack.c.bf16 %v753, %v752
        %v791 = vpack.c.bf16 %v755, %v754
        %v792 = vld [vmem:[%s4] sm:$0xff]
        %v793 = vld [vmem:[%s4 + $0x8] sm:$0xff]
        %v794 = vld [vmem:[%s4 + $0x10] sm:$0xff]
        %v795 = vld [vmem:[%s4 + $0x18] sm:$0xff]
        %v796 = vld [vmem:[%s4 + $0x20] sm:$0xff]
        %v797 = vld [vmem:[%s4 + $0x28] sm:$0xff]
        %v798 = vld [vmem:[%s4 + $0x30] sm:$0xff]
        %v799 = vld [vmem:[%s4 + $0x38] sm:$0xff]
        %v800 = vld [vmem:[%s4 + $0x40] sm:$0xff]
        %v801 = vld [vmem:[%s4 + $0x48] sm:$0xff]
        %v802 = vld [vmem:[%s4 + $0x50] sm:$0xff]
        %v803 = vld [vmem:[%s4 + $0x58] sm:$0xff]
        %v804 = vld [vmem:[%s4 + $0x60] sm:$0xff]
        %v805 = vld [vmem:[%s4 + $0x68] sm:$0xff]
        %v806 = vld [vmem:[%s4 + $0x70] sm:$0xff]
        %v807 = vld [vmem:[%s4 + $0x78] sm:$0xff]
        %v808 = vld [vmem:[%s4 + $0x80] sm:$0xff]
        %v809 = vld [vmem:[%s4 + $0x88] sm:$0xff]
        %v810 = vld [vmem:[%s4 + $0x90] sm:$0xff]
        %v811 = vld [vmem:[%s4 + $0x98] sm:$0xff]
        %v812 = vld [vmem:[%s4 + $0xa0] sm:$0xff]
        %v813 = vld [vmem:[%s4 + $0xa8] sm:$0xff]
        %v814 = vld [vmem:[%s4 + $0xb0] sm:$0xff]
        %v815 = vld [vmem:[%s4 + $0xb8] sm:$0xff]
        %v816 = vld [vmem:[%s4 + $0xc0] sm:$0xff]
        %v817 = vld [vmem:[%s4 + $0xc8] sm:$0xff]
        %v818 = vld [vmem:[%s4 + $0xd0] sm:$0xff]
        %v819 = vld [vmem:[%s4 + $0xd8] sm:$0xff]
        %v820 = vld [vmem:[%s4 + $0xe0] sm:$0xff]
        %v821 = vld [vmem:[%s4 + $0xe8] sm:$0xff]
        %v822 = vld [vmem:[%s4 + $0xf0] sm:$0xff]
        %v823 = vld [vmem:[%s4 + $0xf8] sm:$0xff]
        %825 = vset.pattern.permute.xlu0 0
        %826 = vperm.xlu0 %825, %v792
        %v827 = vpop.permute.xlu0 %826
        %830 = vset.pattern.permute.xlu0 0
        %831 = vperm.xlu0 %830, %v793
        %v832 = vpop.permute.xlu0 %831
        %835 = vset.pattern.permute.xlu0 0
        %836 = vperm.xlu0 %835, %v794
        %v837 = vpop.permute.xlu0 %836
        %840 = vset.pattern.permute.xlu0 0
        %841 = vperm.xlu0 %840, %v795
        %v842 = vpop.permute.xlu0 %841
        %845 = vset.pattern.permute.xlu0 0
        %846 = vperm.xlu0 %845, %v796
        %v847 = vpop.permute.xlu0 %846
        %850 = vset.pattern.permute.xlu0 0
        %851 = vperm.xlu0 %850, %v797
        %v852 = vpop.permute.xlu0 %851
        %855 = vset.pattern.permute.xlu0 0
        %856 = vperm.xlu0 %855, %v798
        %v857 = vpop.permute.xlu0 %856
        %860 = vset.pattern.permute.xlu0 0
        %861 = vperm.xlu0 %860, %v799
        %v862 = vpop.permute.xlu0 %861
        %865 = vset.pattern.permute.xlu0 0
        %866 = vperm.xlu0 %865, %v800
        %v867 = vpop.permute.xlu0 %866
        %870 = vset.pattern.permute.xlu0 0
        %871 = vperm.xlu0 %870, %v801
        %v872 = vpop.permute.xlu0 %871
        %875 = vset.pattern.permute.xlu0 0
        %876 = vperm.xlu0 %875, %v802
        %v877 = vpop.permute.xlu0 %876
        %880 = vset.pattern.permute.xlu0 0
        %881 = vperm.xlu0 %880, %v803
        %v882 = vpop.permute.xlu0 %881
        %885 = vset.pattern.permute.xlu0 0
        %886 = vperm.xlu0 %885, %v804
        %v887 = vpop.permute.xlu0 %886
        %890 = vset.pattern.permute.xlu0 0
        %891 = vperm.xlu0 %890, %v805
        %v892 = vpop.permute.xlu0 %891
        %895 = vset.pattern.permute.xlu0 0
        %896 = vperm.xlu0 %895, %v806
        %v897 = vpop.permute.xlu0 %896
        %900 = vset.pattern.permute.xlu0 0
        %901 = vperm.xlu0 %900, %v807
        %v902 = vpop.permute.xlu0 %901
        %905 = vset.pattern.permute.xlu0 0
        %906 = vperm.xlu0 %905, %v808
        %v907 = vpop.permute.xlu0 %906
        %910 = vset.pattern.permute.xlu0 0
        %911 = vperm.xlu0 %910, %v809
        %v912 = vpop.permute.xlu0 %911
        %915 = vset.pattern.permute.xlu0 0
        %916 = vperm.xlu0 %915, %v810
        %v917 = vpop.permute.xlu0 %916
        %920 = vset.pattern.permute.xlu0 0
        %921 = vperm.xlu0 %920, %v811
        %v922 = vpop.permute.xlu0 %921
        %925 = vset.pattern.permute.xlu0 0
        %926 = vperm.xlu0 %925, %v812
        %v927 = vpop.permute.xlu0 %926
        %930 = vset.pattern.permute.xlu0 0
        %931 = vperm.xlu0 %930, %v813
        %v932 = vpop.permute.xlu0 %931
        %935 = vset.pattern.permute.xlu0 0
        %936 = vperm.xlu0 %935, %v814
        %v937 = vpop.permute.xlu0 %936
        %940 = vset.pattern.permute.xlu0 0
        %941 = vperm.xlu0 %940, %v815
        %v942 = vpop.permute.xlu0 %941
        %945 = vset.pattern.permute.xlu0 0
        %946 = vperm.xlu0 %945, %v816
        %v947 = vpop.permute.xlu0 %946
        %950 = vset.pattern.permute.xlu0 0
        %951 = vperm.xlu0 %950, %v817
        %v952 = vpop.permute.xlu0 %951
        %955 = vset.pattern.permute.xlu0 0
        %956 = vperm.xlu0 %955, %v818
        %v957 = vpop.permute.xlu0 %956
        %960 = vset.pattern.permute.xlu0 0
        %961 = vperm.xlu0 %960, %v819
        %v962 = vpop.permute.xlu0 %961
        %965 = vset.pattern.permute.xlu0 0
        %966 = vperm.xlu0 %965, %v820
        %v967 = vpop.permute.xlu0 %966
        %970 = vset.pattern.permute.xlu0 0
        %971 = vperm.xlu0 %970, %v821
        %v972 = vpop.permute.xlu0 %971
        %975 = vset.pattern.permute.xlu0 0
        %976 = vperm.xlu0 %975, %v822
        %v977 = vpop.permute.xlu0 %976
        %980 = vset.pattern.permute.xlu0 0
        %981 = vperm.xlu0 %980, %v823
        %v982 = vpop.permute.xlu0 %981
        %v1016 = vunpack.c.l.b16 %v756
        %v1017 = vunpack.c.l.b16 %v757
        %v1018 = vunpack.c.l.b16 %v758
        %v1019 = vunpack.c.l.b16 %v759
        %v1020 = vunpack.c.l.b16 %v760
        %v1021 = vunpack.c.l.b16 %v761
        %v1022 = vunpack.c.l.b16 %v762
        %v1023 = vunpack.c.l.b16 %v763
        %v1024 = vunpack.c.l.b16 %v764
        %v1025 = vunpack.c.l.b16 %v765
        %v1026 = vunpack.c.l.b16 %v766
        %v1027 = vunpack.c.l.b16 %v767
        %v1028 = vunpack.c.l.b16 %v768
        %v1029 = vunpack.c.l.b16 %v769
        %v1030 = vunpack.c.l.b16 %v770
        %v1031 = vunpack.c.l.b16 %v771
        %v1032 = vunpack.c.l.b16 %v772
        %v1033 = vunpack.c.l.b16 %v773
        %v1034 = vunpack.c.l.b16 %v774
        %v1035 = vunpack.c.l.b16 %v775
        %v1036 = vunpack.c.l.b16 %v776
        %v1037 = vunpack.c.l.b16 %v777
        %v1038 = vunpack.c.l.b16 %v778
        %v1039 = vunpack.c.l.b16 %v779
        %v1040 = vunpack.c.l.b16 %v780
        %v1041 = vunpack.c.l.b16 %v781
        %v1042 = vunpack.c.l.b16 %v782
        %v1043 = vunpack.c.l.b16 %v783
        %v1044 = vunpack.c.l.b16 %v784
        %v1045 = vunpack.c.l.b16 %v785
        %v1046 = vunpack.c.l.b16 %v786
        %v1047 = vunpack.c.l.b16 %v787
        %v1048 = vpack.c.b16 %v1017, %v1016
        %v1049 = vpack.c.b16 %v1019, %v1018
        %v1050 = vpack.c.b16 %v1021, %v1020
        %v1051 = vpack.c.b16 %v1023, %v1022
        %v1052 = vpack.c.b16 %v1025, %v1024
        %v1053 = vpack.c.b16 %v1027, %v1026
        %v1054 = vpack.c.b16 %v1029, %v1028
        %v1055 = vpack.c.b16 %v1031, %v1030
        %v1056 = vpack.c.b16 %v1033, %v1032
        %v1057 = vpack.c.b16 %v1035, %v1034
        %v1058 = vpack.c.b16 %v1037, %v1036
        %v1059 = vpack.c.b16 %v1039, %v1038
        %v1060 = vpack.c.b16 %v1041, %v1040
        %v1061 = vpack.c.b16 %v1043, %v1042
        %v1062 = vpack.c.b16 %v1045, %v1044
        %v1063 = vpack.c.b16 %v1047, %v1046
        %vm1064 = vcmask 523264
        %v1066 = vsel %vm1064, %v1048, 0
        %v1069 = vsel %vm1064, %v1049, 0
        %v1072 = vsel %vm1064, %v1050, 0
        %v1075 = vsel %vm1064, %v1051, 0
        %v1078 = vsel %vm1064, %v1052, 0
        %v1081 = vsel %vm1064, %v1053, 0
        %v1084 = vsel %vm1064, %v1054, 0
        %v1087 = vsel %vm1064, %v1055, 0
        %v1090 = vsel %vm1064, %v1056, 0
        %v1093 = vsel %vm1064, %v1057, 0
        %v1096 = vsel %vm1064, %v1058, 0
        %v1099 = vsel %vm1064, %v1059, 0
        %v1102 = vsel %vm1064, %v1060, 0
        %v1105 = vsel %vm1064, %v1061, 0
        %v1108 = vsel %vm1064, %v1062, 0
        %v1111 = vsel %vm1064, %v1063, 0
        %1113 = vmatpush.bf16.msra.mxu0 0
        %1114 = vmatpush.bf16.msra.mxu0 0
        %1115 = vmatpush.bf16.msra.mxu0 0
        %1116 = vmatpush.bf16.msra.mxu0 0
        %1117 = vmatpush.bf16.msra.mxu0 %v791
        %1118 = vmatpush.bf16.msra.mxu0 %v790
        %1119 = vmatpush.bf16.msra.mxu0 %v789
        %1120 = vmatpush.bf16.msra.mxu0 %v788
        %1121 = vmatmul.bf16.gmra.mxu0 %v1066
        %v1122 = vpop.f32.mrf.mxu0
        %v1123 = vadd.f32 %v827, %v1122
        %v1124 = vpop.f32.mrf.mxu0
        %v1125 = vadd.f32 %v832, %v1124
        %1126 = vmatmul.bf16.gmra.mxu0 %v1069
        %v1127 = vpop.f32.mrf.mxu0
        %v1128 = vadd.f32 %v837, %v1127
        %v1129 = vpop.f32.mrf.mxu0
        %v1130 = vadd.f32 %v842, %v1129
        %1131 = vmatmul.bf16.gmra.mxu0 %v1072
        %v1132 = vpop.f32.mrf.mxu0
        %v1133 = vadd.f32 %v847, %v1132
        %v1134 = vpop.f32.mrf.mxu0
        %v1135 = vadd.f32 %v852, %v1134
        %1136 = vmatmul.bf16.gmra.mxu0 %v1075
        %v1137 = vpop.f32.mrf.mxu0
        %v1138 = vadd.f32 %v857, %v1137
        %v1139 = vpop.f32.mrf.mxu0
        %v1140 = vadd.f32 %v862, %v1139
        %1141 = vmatmul.bf16.gmra.mxu0 %v1078
        %v1142 = vpop.f32.mrf.mxu0
        %v1143 = vadd.f32 %v867, %v1142
        %v1144 = vpop.f32.mrf.mxu0
        %v1145 = vadd.f32 %v872, %v1144
        %1146 = vmatmul.bf16.gmra.mxu0 %v1081
        %v1147 = vpop.f32.mrf.mxu0
        %v1148 = vadd.f32 %v877, %v1147
        %v1149 = vpop.f32.mrf.mxu0
        %v1150 = vadd.f32 %v882, %v1149
        %1151 = vmatmul.bf16.gmra.mxu0 %v1084
        %v1152 = vpop.f32.mrf.mxu0
        %v1153 = vadd.f32 %v887, %v1152
        %v1154 = vpop.f32.mrf.mxu0
        %v1155 = vadd.f32 %v892, %v1154
        %1156 = vmatmul.bf16.gmra.mxu0 %v1087
        %v1157 = vpop.f32.mrf.mxu0
        %v1158 = vadd.f32 %v897, %v1157
        %v1159 = vpop.f32.mrf.mxu0
        %v1160 = vadd.f32 %v902, %v1159
        %1161 = vmatmul.bf16.gmra.mxu0 %v1090
        %v1162 = vpop.f32.mrf.mxu0
        %v1163 = vadd.f32 %v907, %v1162
        %v1164 = vpop.f32.mrf.mxu0
        %v1165 = vadd.f32 %v912, %v1164
        %1166 = vmatmul.bf16.gmra.mxu0 %v1093
        %v1167 = vpop.f32.mrf.mxu0
        %v1168 = vadd.f32 %v917, %v1167
        %v1169 = vpop.f32.mrf.mxu0
        %v1170 = vadd.f32 %v922, %v1169
        %1171 = vmatmul.bf16.gmra.mxu0 %v1096
        %v1172 = vpop.f32.mrf.mxu0
        %v1173 = vadd.f32 %v927, %v1172
        %v1174 = vpop.f32.mrf.mxu0
        %v1175 = vadd.f32 %v932, %v1174
        %1176 = vmatmul.bf16.gmra.mxu0 %v1099
        %v1177 = vpop.f32.mrf.mxu0
        %v1178 = vadd.f32 %v937, %v1177
        %v1179 = vpop.f32.mrf.mxu0
        %v1180 = vadd.f32 %v942, %v1179
        %1181 = vmatmul.bf16.gmra.mxu0 %v1102
        %v1182 = vpop.f32.mrf.mxu0
        %v1183 = vadd.f32 %v947, %v1182
        %v1184 = vpop.f32.mrf.mxu0
        %v1185 = vadd.f32 %v952, %v1184
        %1186 = vmatmul.bf16.gmra.mxu0 %v1105
        %v1187 = vpop.f32.mrf.mxu0
        %v1188 = vadd.f32 %v957, %v1187
        %v1189 = vpop.f32.mrf.mxu0
        %v1190 = vadd.f32 %v962, %v1189
        %1191 = vmatmul.bf16.gmra.mxu0 %v1108
        %v1192 = vpop.f32.mrf.mxu0
        %v1193 = vadd.f32 %v967, %v1192
        %v1194 = vpop.f32.mrf.mxu0
        %v1195 = vadd.f32 %v972, %v1194
        %1196 = vmatmul.bf16.gmra.mxu0 %v1111
        %v1197 = vpop.f32.mrf.mxu0
        %v1198 = vadd.f32 %v977, %v1197
        %v1199 = vpop.f32.mrf.mxu0
        %v1200 = vadd.f32 %v982, %v1199
        %1201 = vdwg.mxu0
        %v1202 = vmax.f32 %v1123, 0.0
        %v1203 = vmax.f32 %v1125, 0.0
        %v1204 = vmax.f32 %v1128, 0.0
        %v1205 = vmax.f32 %v1130, 0.0
        %v1206 = vmax.f32 %v1133, 0.0
        %v1207 = vmax.f32 %v1135, 0.0
        %v1208 = vmax.f32 %v1138, 0.0
        %v1209 = vmax.f32 %v1140, 0.0
        %v1210 = vmax.f32 %v1143, 0.0
        %v1211 = vmax.f32 %v1145, 0.0
        %v1212 = vmax.f32 %v1148, 0.0
        %v1213 = vmax.f32 %v1150, 0.0
        %v1214 = vmax.f32 %v1153, 0.0
        %v1215 = vmax.f32 %v1155, 0.0
        %v1216 = vmax.f32 %v1158, 0.0
        %v1217 = vmax.f32 %v1160, 0.0
        %v1218 = vmax.f32 %v1163, 0.0
        %v1219 = vmax.f32 %v1165, 0.0
        %v1220 = vmax.f32 %v1168, 0.0
        %v1221 = vmax.f32 %v1170, 0.0
        %v1222 = vmax.f32 %v1173, 0.0
        %v1223 = vmax.f32 %v1175, 0.0
        %v1224 = vmax.f32 %v1178, 0.0
        %v1225 = vmax.f32 %v1180, 0.0
        %v1226 = vmax.f32 %v1183, 0.0
        %v1227 = vmax.f32 %v1185, 0.0
        %v1228 = vmax.f32 %v1188, 0.0
        %v1229 = vmax.f32 %v1190, 0.0
        %v1230 = vmax.f32 %v1193, 0.0
        %v1231 = vmax.f32 %v1195, 0.0
        %v1232 = vmax.f32 %v1198, 0.0
        %v1233 = vmax.f32 %v1200, 0.0
        %1234 = vst [vmem:[%s459] sm:$0xff] %v1202
        %1235 = vst [vmem:[%s459 + $0x8] sm:$0xff] %v1203
        %1236 = vst [vmem:[%s459 + $0x10] sm:$0xff] %v1204
        %1237 = vst [vmem:[%s459 + $0x18] sm:$0xff] %v1205
        %1238 = vst [vmem:[%s459 + $0x20] sm:$0xff] %v1206
        %1239 = vst [vmem:[%s459 + $0x28] sm:$0xff] %v1207
        %1240 = vst [vmem:[%s459 + $0x30] sm:$0xff] %v1208
        %1241 = vst [vmem:[%s459 + $0x38] sm:$0xff] %v1209
        %1242 = vst [vmem:[%s459 + $0x40] sm:$0xff] %v1210
        %1243 = vst [vmem:[%s459 + $0x48] sm:$0xff] %v1211
        %1244 = vst [vmem:[%s459 + $0x50] sm:$0xff] %v1212
        %1245 = vst [vmem:[%s459 + $0x58] sm:$0xff] %v1213
        %1246 = vst [vmem:[%s459 + $0x60] sm:$0xff] %v1214
        %1247 = vst [vmem:[%s459 + $0x68] sm:$0xff] %v1215
        %1248 = vst [vmem:[%s459 + $0x70] sm:$0xff] %v1216
        %1249 = vst [vmem:[%s459 + $0x78] sm:$0xff] %v1217
        %1250 = vst [vmem:[%s459 + $0x80] sm:$0xff] %v1218
        %1251 = vst [vmem:[%s459 + $0x88] sm:$0xff] %v1219
        %1252 = vst [vmem:[%s459 + $0x90] sm:$0xff] %v1220
        %1253 = vst [vmem:[%s459 + $0x98] sm:$0xff] %v1221
        %1254 = vst [vmem:[%s459 + $0xa0] sm:$0xff] %v1222
        %1255 = vst [vmem:[%s459 + $0xa8] sm:$0xff] %v1223
        %1256 = vst [vmem:[%s459 + $0xb0] sm:$0xff] %v1224
        %1257 = vst [vmem:[%s459 + $0xb8] sm:$0xff] %v1225
        %1258 = vst [vmem:[%s459 + $0xc0] sm:$0xff] %v1226
        %1259 = vst [vmem:[%s459 + $0xc8] sm:$0xff] %v1227
        %1260 = vst [vmem:[%s459 + $0xd0] sm:$0xff] %v1228
        %1261 = vst [vmem:[%s459 + $0xd8] sm:$0xff] %v1229
        %1262 = vst [vmem:[%s459 + $0xe0] sm:$0xff] %v1230
        %1263 = vst [vmem:[%s459 + $0xe8] sm:$0xff] %v1231
        %1264 = vst [vmem:[%s459 + $0xf0] sm:$0xff] %v1232
        %1265 = vst [vmem:[%s459 + $0xf8] sm:$0xff] %v1233
        %s1266 = sand.u32 %s150, 1
        %s1267 = sand.u32 %s150, 1
        %s1268 = smul.addr %s1267, 256
        %s1269 = scalar_lea.vmem [#allocation3], %s1268
        // Predicated region
        $region79: #{fused_1x1_convs.1} parent=73 // pred_check
          %p1270 = pneg %p160
        $region80: #{fused_1x1_convs.1} parent=73 // pred_check_branch
          %1272 = sbr.rel (%p1270) target = $region82
        $region81: #{fused_1x1_convs.1} parent=73 // pred_region
          %s1273 = smul.addr %s20, 64
          %s1274 = sadd.s32 %s21, %s1273
          %s1275 = smul.addr %s1274, 8
          %s1276 = scalar_lea.vmem %s5, %s1275
          // Predicated region
          $region83: #{fused_1x1_convs.1} parent=81 // pred_check
            _
          $region84: #{fused_1x1_convs.1} parent=81 // pred_check_branch
            %1278 = sbr.rel (0) target = $region86
          $region85: #{fused_1x1_convs.1} parent=81 // pred_region
            // Predicated region
            $region87: #{fused_1x1_convs.1} parent=85 // pred_check
              _
            $region88: #{fused_1x1_convs.1} parent=85 // pred_check_branch
              %1280 = sbr.rel (0) target = $region90
            $region89: #{fused_1x1_convs.1} parent=85 // pred_region
              // Predicated region
              $region102: #{fused_1x1_convs.1} parent=89 // pred_check
                _
              $region103: #{fused_1x1_convs.1} parent=89 // pred_check_branch
                %1358 = sbr.rel (0) target = $region105
              $region104: #{fused_1x1_convs.1} parent=89 // pred_region
                loop: start=0, step=1, limit=1
                $region106: #{fused_1x1_convs.1} parent=104 // loop_pre_header
                  _
                $region107: #{fused_1x1_convs.1} parent=104 // loop_header
                  %s1360 = sphi 0, %s1364
                  %p1361 = scmp.ge.s32.totalorder %s1360, 1
                  %s1365 = sphi %s1269, %s1269
                  %s1366 = sphi %s1276, %s1276
                $region108: #{fused_1x1_convs.1} parent=104 // loop_header_branch
                  %1363 = sbr.rel (%p1361) target = $region112
                $region109: #{fused_1x1_convs.1} parent=104 // loop_body
                  %v1367 = vld [vmem:[%s1365] sm:$0xff]
                  %1368 = vst [vmem:[%s1366] sm:$0xff] %v1367
                  %v1369 = vld [vmem:[%s1365 + $0x8] sm:$0xff]
                  %1370 = vst [vmem:[%s1366 + $0x10] sm:$0xff] %v1369
                  %v1371 = vld [vmem:[%s1365 + $0x10] sm:$0xff]
                  %1372 = vst [vmem:[%s1366 + $0x20] sm:$0xff] %v1371
                  %v1373 = vld [vmem:[%s1365 + $0x18] sm:$0xff]
                  %1374 = vst [vmem:[%s1366 + $0x30] sm:$0xff] %v1373
                  %v1375 = vld [vmem:[%s1365 + $0x20] sm:$0xff]
                  %1376 = vst [vmem:[%s1366 + $0x40] sm:$0xff] %v1375
                  %v1377 = vld [vmem:[%s1365 + $0x28] sm:$0xff]
                  %1378 = vst [vmem:[%s1366 + $0x50] sm:$0xff] %v1377
                  %v1379 = vld [vmem:[%s1365 + $0x30] sm:$0xff]
                  %1380 = vst [vmem:[%s1366 + $0x60] sm:$0xff] %v1379
                  %v1381 = vld [vmem:[%s1365 + $0x38] sm:$0xff]
                  %1382 = vst [vmem:[%s1366 + $0x70] sm:$0xff] %v1381
                  %v1383 = vld [vmem:[%s1365 + $0x40] sm:$0xff]
                  %1384 = vst [vmem:[%s1366 + $0x80] sm:$0xff] %v1383
                  %v1385 = vld [vmem:[%s1365 + $0x48] sm:$0xff]
                  %1386 = vst [vmem:[%s1366 + $0x90] sm:$0xff] %v1385
                  %v1387 = vld [vmem:[%s1365 + $0x50] sm:$0xff]
                  %1388 = vst [vmem:[%s1366 + $0xa0] sm:$0xff] %v1387
                  %v1389 = vld [vmem:[%s1365 + $0x58] sm:$0xff]
                  %1390 = vst [vmem:[%s1366 + $0xb0] sm:$0xff] %v1389
                  %v1391 = vld [vmem:[%s1365 + $0x60] sm:$0xff]
                  %1392 = vst [vmem:[%s1366 + $0xc0] sm:$0xff] %v1391
                  %v1393 = vld [vmem:[%s1365 + $0x68] sm:$0xff]
                  %1394 = vst [vmem:[%s1366 + $0xd0] sm:$0xff] %v1393
                  %v1395 = vld [vmem:[%s1365 + $0x70] sm:$0xff]
                  %1396 = vst [vmem:[%s1366 + $0xe0] sm:$0xff] %v1395
                  %v1397 = vld [vmem:[%s1365 + $0x78] sm:$0xff]
                  %1398 = vst [vmem:[%s1366 + $0xf0] sm:$0xff] %v1397
                  %v1399 = vld [vmem:[%s1365 + $0x80] sm:$0xff]
                  %1400 = vst [vmem:[%s1366 + $0x100] sm:$0xff] %v1399
                  %v1401 = vld [vmem:[%s1365 + $0x88] sm:$0xff]
                  %1402 = vst [vmem:[%s1366 + $0x110] sm:$0xff] %v1401
                  %v1403 = vld [vmem:[%s1365 + $0x90] sm:$0xff]
                  %1404 = vst [vmem:[%s1366 + $0x120] sm:$0xff] %v1403
                  %v1405 = vld [vmem:[%s1365 + $0x98] sm:$0xff]
                  %1406 = vst [vmem:[%s1366 + $0x130] sm:$0xff] %v1405
                  %v1407 = vld [vmem:[%s1365 + $0xa0] sm:$0xff]
                  %1408 = vst [vmem:[%s1366 + $0x140] sm:$0xff] %v1407
                  %v1409 = vld [vmem:[%s1365 + $0xa8] sm:$0xff]
                  %1410 = vst [vmem:[%s1366 + $0x150] sm:$0xff] %v1409
                  %v1411 = vld [vmem:[%s1365 + $0xb0] sm:$0xff]
                  %1412 = vst [vmem:[%s1366 + $0x160] sm:$0xff] %v1411
                  %v1413 = vld [vmem:[%s1365 + $0xb8] sm:$0xff]
                  %1414 = vst [vmem:[%s1366 + $0x170] sm:$0xff] %v1413
                  %v1415 = vld [vmem:[%s1365 + $0xc0] sm:$0xff]
                  %1416 = vst [vmem:[%s1366 + $0x180] sm:$0xff] %v1415
                  %v1417 = vld [vmem:[%s1365 + $0xc8] sm:$0xff]
                  %1418 = vst [vmem:[%s1366 + $0x190] sm:$0xff] %v1417
                  %v1419 = vld [vmem:[%s1365 + $0xd0] sm:$0xff]
                  %1420 = vst [vmem:[%s1366 + $0x1a0] sm:$0xff] %v1419
                  %v1421 = vld [vmem:[%s1365 + $0xd8] sm:$0xff]
                  %1422 = vst [vmem:[%s1366 + $0x1b0] sm:$0xff] %v1421
                  %v1423 = vld [vmem:[%s1365 + $0xe0] sm:$0xff]
                  %1424 = vst [vmem:[%s1366 + $0x1c0] sm:$0xff] %v1423
                  %v1425 = vld [vmem:[%s1365 + $0xe8] sm:$0xff]
                  %1426 = vst [vmem:[%s1366 + $0x1d0] sm:$0xff] %v1425
                  %v1427 = vld [vmem:[%s1365 + $0xf0] sm:$0xff]
                  %1428 = vst [vmem:[%s1366 + $0x1e0] sm:$0xff] %v1427
                  %v1429 = vld [vmem:[%s1365 + $0xf8] sm:$0xff]
                  %1430 = vst [vmem:[%s1366 + $0x1f0] sm:$0xff] %v1429
                $region110: #{fused_1x1_convs.1} parent=104 // loop_footer
                  %s1364 = sadd.s32 1, %s1360
                $region111: #{fused_1x1_convs.1} parent=104 // loop_footer_branch
                  %1359 = sbr.rel target = $region107
                $region112: #{fused_1x1_convs.1} parent=104 // loop_exit
                  _
              $region105: #{fused_1x1_convs.1} parent=89 // pred_fallthru
                _
              // Predicated region
              $region113: #{fused_1x1_convs.1} parent=89 // pred_check
                _
              $region114: #{fused_1x1_convs.1} parent=89 // pred_check_branch
                %1432 = sbr.rel target = $region116
              $region115: #{fused_1x1_convs.1} parent=89 // pred_region
                _
              $region116: #{fused_1x1_convs.1} parent=89 // pred_fallthru
                _
            $region90: #{fused_1x1_convs.1} parent=85 // pred_fallthru
              _
            // Predicated region
            $region91: #{fused_1x1_convs.1} parent=85 // pred_check
              _
            $region92: #{fused_1x1_convs.1} parent=85 // pred_check_branch
              %1282 = sbr.rel target = $region94
            $region93: #{fused_1x1_convs.1} parent=85 // pred_region
              %s1284 = ssub.s32 256, 1
              loop: start=0, step=1, limit=1
              $region95: #{fused_1x1_convs.1} parent=93 // loop_pre_header
                _
              $region96: #{fused_1x1_convs.1} parent=93 // loop_header
                %s1286 = sphi 0, %s1290
                %p1287 = scmp.ge.s32.totalorder %s1286, 1
                %s1291 = sphi %s1269, %s1269
                %s1292 = sphi %s1276, %s1276
              $region97: #{fused_1x1_convs.1} parent=93 // loop_header_branch
                %1289 = sbr.rel (%p1287) target = $region101
              $region98: #{fused_1x1_convs.1} parent=93 // loop_body
                %v1293 = vld [vmem:[%s1291] sm:%s1284]
                %1294 = vst [vmem:[%s1292] sm:%s1284] %v1293
                %v1295 = vld [vmem:[%s1291 + $0x8] sm:%s1284]
                %1296 = vst [vmem:[%s1292 + $0x10] sm:%s1284] %v1295
                %v1297 = vld [vmem:[%s1291 + $0x10] sm:%s1284]
                %1298 = vst [vmem:[%s1292 + $0x20] sm:%s1284] %v1297
                %v1299 = vld [vmem:[%s1291 + $0x18] sm:%s1284]
                %1300 = vst [vmem:[%s1292 + $0x30] sm:%s1284] %v1299
                %v1301 = vld [vmem:[%s1291 + $0x20] sm:%s1284]
                %1302 = vst [vmem:[%s1292 + $0x40] sm:%s1284] %v1301
                %v1303 = vld [vmem:[%s1291 + $0x28] sm:%s1284]
                %1304 = vst [vmem:[%s1292 + $0x50] sm:%s1284] %v1303
                %v1305 = vld [vmem:[%s1291 + $0x30] sm:%s1284]
                %1306 = vst [vmem:[%s1292 + $0x60] sm:%s1284] %v1305
                %v1307 = vld [vmem:[%s1291 + $0x38] sm:%s1284]
                %1308 = vst [vmem:[%s1292 + $0x70] sm:%s1284] %v1307
                %v1309 = vld [vmem:[%s1291 + $0x40] sm:%s1284]
                %1310 = vst [vmem:[%s1292 + $0x80] sm:%s1284] %v1309
                %v1311 = vld [vmem:[%s1291 + $0x48] sm:%s1284]
                %1312 = vst [vmem:[%s1292 + $0x90] sm:%s1284] %v1311
                %v1313 = vld [vmem:[%s1291 + $0x50] sm:%s1284]
                %1314 = vst [vmem:[%s1292 + $0xa0] sm:%s1284] %v1313
                %v1315 = vld [vmem:[%s1291 + $0x58] sm:%s1284]
                %1316 = vst [vmem:[%s1292 + $0xb0] sm:%s1284] %v1315
                %v1317 = vld [vmem:[%s1291 + $0x60] sm:%s1284]
                %1318 = vst [vmem:[%s1292 + $0xc0] sm:%s1284] %v1317
                %v1319 = vld [vmem:[%s1291 + $0x68] sm:%s1284]
                %1320 = vst [vmem:[%s1292 + $0xd0] sm:%s1284] %v1319
                %v1321 = vld [vmem:[%s1291 + $0x70] sm:%s1284]
                %1322 = vst [vmem:[%s1292 + $0xe0] sm:%s1284] %v1321
                %v1323 = vld [vmem:[%s1291 + $0x78] sm:%s1284]
                %1324 = vst [vmem:[%s1292 + $0xf0] sm:%s1284] %v1323
                %v1325 = vld [vmem:[%s1291 + $0x80] sm:%s1284]
                %1326 = vst [vmem:[%s1292 + $0x100] sm:%s1284] %v1325
                %v1327 = vld [vmem:[%s1291 + $0x88] sm:%s1284]
                %1328 = vst [vmem:[%s1292 + $0x110] sm:%s1284] %v1327
                %v1329 = vld [vmem:[%s1291 + $0x90] sm:%s1284]
                %1330 = vst [vmem:[%s1292 + $0x120] sm:%s1284] %v1329
                %v1331 = vld [vmem:[%s1291 + $0x98] sm:%s1284]
                %1332 = vst [vmem:[%s1292 + $0x130] sm:%s1284] %v1331
                %v1333 = vld [vmem:[%s1291 + $0xa0] sm:%s1284]
                %1334 = vst [vmem:[%s1292 + $0x140] sm:%s1284] %v1333
                %v1335 = vld [vmem:[%s1291 + $0xa8] sm:%s1284]
                %1336 = vst [vmem:[%s1292 + $0x150] sm:%s1284] %v1335
                %v1337 = vld [vmem:[%s1291 + $0xb0] sm:%s1284]
                %1338 = vst [vmem:[%s1292 + $0x160] sm:%s1284] %v1337
                %v1339 = vld [vmem:[%s1291 + $0xb8] sm:%s1284]
                %1340 = vst [vmem:[%s1292 + $0x170] sm:%s1284] %v1339
                %v1341 = vld [vmem:[%s1291 + $0xc0] sm:%s1284]
                %1342 = vst [vmem:[%s1292 + $0x180] sm:%s1284] %v1341
                %v1343 = vld [vmem:[%s1291 + $0xc8] sm:%s1284]
                %1344 = vst [vmem:[%s1292 + $0x190] sm:%s1284] %v1343
                %v1345 = vld [vmem:[%s1291 + $0xd0] sm:%s1284]
                %1346 = vst [vmem:[%s1292 + $0x1a0] sm:%s1284] %v1345
                %v1347 = vld [vmem:[%s1291 + $0xd8] sm:%s1284]
                %1348 = vst [vmem:[%s1292 + $0x1b0] sm:%s1284] %v1347
                %v1349 = vld [vmem:[%s1291 + $0xe0] sm:%s1284]
                %1350 = vst [vmem:[%s1292 + $0x1c0] sm:%s1284] %v1349
                %v1351 = vld [vmem:[%s1291 + $0xe8] sm:%s1284]
                %1352 = vst [vmem:[%s1292 + $0x1d0] sm:%s1284] %v1351
                %v1353 = vld [vmem:[%s1291 + $0xf0] sm:%s1284]
                %1354 = vst [vmem:[%s1292 + $0x1e0] sm:%s1284] %v1353
                %v1355 = vld [vmem:[%s1291 + $0xf8] sm:%s1284]
                %1356 = vst [vmem:[%s1292 + $0x1f0] sm:%s1284] %v1355
              $region99: #{fused_1x1_convs.1} parent=93 // loop_footer
                %s1290 = sadd.s32 1, %s1286
              $region100: #{fused_1x1_convs.1} parent=93 // loop_footer_branch
                %1285 = sbr.rel target = $region96
              $region101: #{fused_1x1_convs.1} parent=93 // loop_exit
                _
            $region94: #{fused_1x1_convs.1} parent=85 // pred_fallthru
              _
          $region86: #{fused_1x1_convs.1} parent=81 // pred_fallthru
            _
          %1433 = vnop
        $region82: #{fused_1x1_convs.1} parent=73 // pred_fallthru
          _
      $region74: #{fused_1x1_convs.1} parent=5 // pred_fallthru
        _
      %p1434 = scmp.le.s32.totalorder 2, %s11
      // Predicated region
      $region117: #{fused_1x1_convs.1} parent=5 // pred_check
        %p1435 = pneg %p1434
      $region118: #{fused_1x1_convs.1} parent=5 // pred_check_branch
        %1437 = sbr.rel (%p1435) target = $region120
      $region119: #{fused_1x1_convs.1} parent=5 // pred_region
        %s1438 = ssub.s32 %s11, 2
        // Predicated region
        $region121: #{fused_1x1_convs.1} parent=119 // pred_check
          %p1439 = pneg %p166
        $region122: #{fused_1x1_convs.1} parent=119 // pred_check_branch
          %1441 = sbr.rel (%p1439) target = $region124
        $region123: #{fused_1x1_convs.1} parent=119 // pred_region
          %s1442 = sand.u32 %s151, 1
          %s1443 = sand.u32 %s151, 1
          %s1444 = smul.addr %s1443, 256
          %s1445 = scalar_lea.vmem [#allocation3], %s1444
        $region124: #{fused_1x1_convs.1} parent=119 // pred_fallthru
          _
      $region120: #{fused_1x1_convs.1} parent=5 // pred_fallthru
        _
    $region6: #{fused_1x1_convs.1} parent=1 // loop_footer
      %s15 = sadd.s32 1, %s11
    $region7: #{fused_1x1_convs.1} parent=1 // loop_footer_branch
      %10 = sbr.rel target = $region3
    $region8: #{fused_1x1_convs.1} parent=1 // loop_exit
      _

</llo_original>
